<compile_context>
chip_gen: v7x
topology: tpu7x:2x2x1
jax: 0.10.0
libtpu: 0.0.40
codegen_flags: <defaults>
</compile_context>

<pallas_src>
import functools
import math

import jax
import jax.numpy as jnp
from jax.experimental import pallas as pl
from jax.experimental.pallas import tpu as pltpu

# ----------------------------- config -------------------------------------
VOCAB = 100
HIDDEN = 32
NUM_LAYERS = 2
NUM_HEADS = 4
HEAD_DIM = HIDDEN // NUM_HEADS
INTERMEDIATE = 64
MAX_POS = 40
PAD_ID = 1          # RoBERTa padding_idx
LN_EPS = 1e-5
MASK_NEG = -1e9


# ----------------------------- in-kernel helpers ---------------------------
def _layernorm(x, g, b):
    # f32 statistics (keep f32 even when matmul inputs are bf16).
    mu = jnp.mean(x, axis=-1, keepdims=True)
    d = x - mu
    var = jnp.mean(d * d, axis=-1, keepdims=True)
    return d * jax.lax.rsqrt(var + LN_EPS) * g + b


def _gelu_erf(x):
    # exact (erf) GELU, matching HF "gelu"
    return 0.5 * x * (1.0 + jax.lax.erf(x * (1.0 / math.sqrt(2.0))))


# ----------------------------- Pallas kernels ------------------------------
def _ln_kernel(x_ref, g_ref, b_ref, o_ref):
    # LayerNorm only (no residual, no zero operand).
    o_ref[0] = _layernorm(x_ref[0], g_ref[...], b_ref[...])


def embedding_layernorm(x, gamma, beta):
    B, S, H = x.shape
    return pl.pallas_call(
        _ln_kernel,
        out_shape=jax.ShapeDtypeStruct((B, S, H), jnp.float32),
        grid=(B,),
        in_specs=[
            pl.BlockSpec((1, S, H), lambda b: (b, 0, 0)),
            pl.BlockSpec((1, H), lambda b: (0, 0)),
            pl.BlockSpec((1, H), lambda b: (0, 0)),
        ],
        out_specs=pl.BlockSpec((1, S, H), lambda b: (b, 0, 0)),
        compiler_params=pltpu.CompilerParams(
            dimension_semantics=("parallel",)),
    )(x, gamma, beta)


def _encoder_layer_kernel(x_ref, mask_ref, qkv_w_ref, qkv_b_ref,
                          o_w_ref, o_b_ref, ln1_g_ref, ln1_b_ref,
                          w1_ref, b1_ref, w2_ref, b2_ref,
                          ln2_g_ref, ln2_b_ref, out_ref, *, scale):
    # One batch element per grid step: x is (S, H) f32.
    x = x_ref[0]
    # additive attention mask built in-kernel from the raw (1, S) float mask
    add_mask = (1.0 - mask_ref[0]) * MASK_NEG          # (1, S)

    # ---- fused QKV projection (bf16 MXU inputs, f32 accumulation) ----
    qkv = jnp.dot(x.astype(jnp.bfloat16), qkv_w_ref[...],
                  preferred_element_type=jnp.float32) + qkv_b_ref[...]
    q = qkv[:, 0:HIDDEN]
    k = qkv[:, HIDDEN:2 * HIDDEN]
    v = qkv[:, 2 * HIDDEN:3 * HIDDEN]

    # ---- per-head scaled-dot-product attention ----
    # Output projection is folded into the head loop:
    #   attn_out = sum_h ctx_h @ o_w[h]  (+ bias)
    # which equals concat(ctx_h) @ o_w and avoids an in-kernel lane concat.
    attn_out = o_b_ref[...]                             # (1, H), broadcasts
    for h in range(NUM_HEADS):
        lo, hi = h * HEAD_DIM, (h + 1) * HEAD_DIM
        qh = q[:, lo:hi].astype(jnp.bfloat16)           # (S, D)
        kh = k[:, lo:hi].astype(jnp.bfloat16)
        vh = v[:, lo:hi].astype(jnp.bfloat16)
        s = jax.lax.dot_general(                        # q @ k^T, (S, S) f32
            qh, kh, (((1,), (1,)), ((), ())),
            preferred_element_type=jnp.float32)
        s = s * scale + add_mask
        s_max = jnp.max(s, axis=-1, keepdims=True)
        p = jnp.exp(s - s_max)
        denom = jnp.sum(p, axis=-1, keepdims=True)
        p = p * pl.reciprocal(denom, approx=True)       # EUP reciprocal
        ctx_h = jnp.dot(p.astype(jnp.bfloat16), vh,
                        preferred_element_type=jnp.float32)   # (S, D)
        attn_out = attn_out + jnp.dot(ctx_h.astype(jnp.bfloat16),
                                      o_w_ref[h],
                                      preferred_element_type=jnp.float32)

    # ---- residual + LayerNorm ----
    h1 = _layernorm(attn_out + x, ln1_g_ref[...], ln1_b_ref[...])

    # ---- feed-forward (GELU) + residual + LayerNorm ----
    inter = jnp.dot(h1.astype(jnp.bfloat16), w1_ref[...],
                    preferred_element_type=jnp.float32) + b1_ref[...]
    inter = _gelu_erf(inter)
    ffn_out = jnp.dot(inter.astype(jnp.bfloat16), w2_ref[...],
                      preferred_element_type=jnp.float32) + b2_ref[...]
    out_ref[0] = _layernorm(ffn_out + h1, ln2_g_ref[...], ln2_b_ref[...])


def encoder_layer(hidden, mask, lp):
    B, S, H = hidden.shape

    def full(shape):
        return pl.BlockSpec(shape, lambda b, _n=len(shape): (0,) * _n)

    return pl.pallas_call(
        functools.partial(_encoder_layer_kernel,
                          scale=1.0 / math.sqrt(HEAD_DIM)),
        out_shape=jax.ShapeDtypeStruct((B, S, H), jnp.float32),
        grid=(B,),
        in_specs=[
            pl.BlockSpec((1, S, H), lambda b: (b, 0, 0)),       # hidden
            pl.BlockSpec((1, 1, S), lambda b: (b, 0, 0)),       # raw mask
            full((H, 3 * H)), full((1, 3 * H)),                 # fused QKV
            full((NUM_HEADS, HEAD_DIM, H)), full((1, H)),       # out proj
            full((1, H)), full((1, H)),                         # attn LN
            full((H, INTERMEDIATE)), full((1, INTERMEDIATE)),   # FFN w1
            full((INTERMEDIATE, H)), full((1, H)),              # FFN w2
            full((1, H)), full((1, H)),                         # FFN LN
        ],
        out_specs=pl.BlockSpec((1, S, H), lambda b: (b, 0, 0)),
        compiler_params=pltpu.CompilerParams(
            dimension_semantics=("parallel",)),
    )(hidden, mask,
      lp["qkv_w"], lp["qkv_b"], lp["o_w"], lp["o_b"],
      lp["ln1_g"], lp["ln1_b"], lp["ffn_w1"], lp["ffn_b1"],
      lp["ffn_w2"], lp["ffn_b2"], lp["ln2_g"], lp["ln2_b"])


# ----------------------------- parameter init ------------------------------
def init_params(key):
    def normal(key, shape, std=0.02):
        return (std * jax.random.normal(key, shape)).astype(jnp.float32)

    keys = iter(jax.random.split(key, 64))
    p = {}
    word = normal(next(keys), (VOCAB, HIDDEN))
    word = word.at[PAD_ID].set(0.0)  # padding_idx row zeroed (HF behavior)
    p["word_emb"] = word
    p["pos_emb"] = normal(next(keys), (MAX_POS, HIDDEN))
    p["type_emb"] = normal(next(keys), (1, HIDDEN))
    p["emb_ln_g"] = jnp.ones((1, HIDDEN), jnp.float32)
    p["emb_ln_b"] = jnp.zeros((1, HIDDEN), jnp.float32)

    p["layers"] = []
    for _ in range(NUM_LAYERS):
        q_w = normal(next(keys), (HIDDEN, HIDDEN))
        k_w = normal(next(keys), (HIDDEN, HIDDEN))
        v_w = normal(next(keys), (HIDDEN, HIDDEN))
        o_w = normal(next(keys), (HIDDEN, HIDDEN))
        lp = {
            # fused QKV weight (H, 3H); matmul weights stored bf16 (MXU-native)
            "qkv_w": jnp.concatenate([q_w, k_w, v_w], axis=1).astype(jnp.bfloat16),
            "qkv_b": jnp.zeros((1, 3 * HIDDEN), jnp.float32),
            # output projection pre-split per head: (NUM_HEADS, HEAD_DIM, H)
            "o_w": o_w.reshape(NUM_HEADS, HEAD_DIM, HIDDEN).astype(jnp.bfloat16),
            "o_b": jnp.zeros((1, HIDDEN), jnp.float32),
            "ln1_g": jnp.ones((1, HIDDEN), jnp.float32),
            "ln1_b": jnp.zeros((1, HIDDEN), jnp.float32),
            "ffn_w1": normal(next(keys), (HIDDEN, INTERMEDIATE)).astype(jnp.bfloat16),
            "ffn_b1": jnp.zeros((1, INTERMEDIATE), jnp.float32),
            "ffn_w2": normal(next(keys), (INTERMEDIATE, HIDDEN)).astype(jnp.bfloat16),
            "ffn_b2": jnp.zeros((1, HIDDEN), jnp.float32),
            "ln2_g": jnp.ones((1, HIDDEN), jnp.float32),
            "ln2_b": jnp.zeros((1, HIDDEN), jnp.float32),
        }
        p["layers"].append(lp)

    p["pool_w"] = normal(next(keys), (HIDDEN, HIDDEN))
    p["pool_b"] = jnp.zeros((HIDDEN,), jnp.float32)
    return p


# ----------------------------- forward pass --------------------------------
def roberta_forward(params, input_ids, attention_mask=None):
    """Mirrors Roberta.forward: returns (last_hidden_state, pooler_output)."""
    B, S = input_ids.shape
    if attention_mask is None:
        attention_mask = jnp.ones((B, S), jnp.float32)
    attention_mask = attention_mask.astype(jnp.float32)

    # --- embeddings (table gathers are glue; LayerNorm is a Pallas kernel) ---
    not_pad = (input_ids != PAD_ID).astype(jnp.int32)
    position_ids = jnp.cumsum(not_pad, axis=1) * not_pad + PAD_ID  # RoBERTa convention
    emb = (jnp.take(params["word_emb"], input_ids, axis=0)
           + jnp.take(params["pos_emb"], position_ids, axis=0)
           + params["type_emb"][0][None, None, :])
    hidden = embedding_layernorm(emb, params["emb_ln_g"], params["emb_ln_b"])

    # raw mask, (B, 1, S); the additive -1e9 mask is built inside the kernel
    mask = attention_mask.reshape(B, 1, S)

    for lp in params["layers"]:
        hidden = encoder_layer(hidden, mask, lp)

    last_hidden_state = hidden                      # (B, S, H)
    # pooler: tanh(W @ h[:, 0] + b) -- tiny, leave to XLA (a Pallas launch
    # for a 2x32 output is pure overhead).
    cls = last_hidden_state[:, 0, :]
    pooler_output = jnp.tanh(cls @ params["pool_w"] + params["pool_b"])
    return last_hidden_state, pooler_output


# ----------------------------- main -----------------------------------------
if __name__ == "__main__":
    key = jax.random.PRNGKey(0)
    pkey, ikey = jax.random.split(key)
    params = init_params(pkey)

    B, S = 2, 8
    input_ids = jax.random.randint(ikey, (B, S), 3, VOCAB, dtype=jnp.int32)
    attention_mask = jnp.ones((B, S), jnp.float32)

    forward = jax.jit(roberta_forward)
    last_hidden, pooled = forward(params, input_ids, attention_mask)
    jax.block_until_ready((last_hidden, pooled))

    assert last_hidden.shape == (B, S, HIDDEN)
    assert pooled.shape == (B, HIDDEN)
    print("KERNEL_OK")
</pallas_src>

<mosaic_0001>
module attributes {stable_mosaic.version = 11 : i64} {
  func.func @_ln_kernel(%arg0: i32, %arg1: memref<1x8x32xf32, #tpu.memory_space<vmem>>, %arg2: memref<1x32xf32, #tpu.memory_space<vmem>>, %arg3: memref<1x32xf32, #tpu.memory_space<vmem>>, %arg4: memref<1x8x32xf32, #tpu.memory_space<vmem>>) attributes {dimension_semantics = [#tpu.dimension_semantics<parallel>], iteration_bounds = array<i64: 2>, scalar_prefetch = 0 : i64, scratch_operands = 0 : i64, tpu.core_type = #tpu.core_type<tc>, window_params = [{transform_indices = @transform_0, window_bounds = array<i64: 1, 8, 32>}, {pipeline_mode = #tpu.pipeline_mode<synchronous>, transform_indices = @transform_1, window_bounds = array<i64: 1, 32>}, {pipeline_mode = #tpu.pipeline_mode<synchronous>, transform_indices = @transform_2, window_bounds = array<i64: 1, 32>}, {transform_indices = @transform_3, window_bounds = array<i64: 1, 8, 32>}]} {
    %c0 = arith.constant 0 : index
    %c0_0 = arith.constant 0 : index
    %c0_1 = arith.constant 0 : index
    %0 = vector.load %arg1[%c0, %c0_0, %c0_1] : memref<1x8x32xf32, #tpu.memory_space<vmem>>, vector<1x8x32xf32>
    %1 = vector.shape_cast %0 : vector<1x8x32xf32> to vector<8x32xf32>
    %c0_2 = arith.constant 0 : index
    %c0_3 = arith.constant 0 : index
    %2 = vector.load %arg2[%c0_2, %c0_3] : memref<1x32xf32, #tpu.memory_space<vmem>>, vector<1x32xf32>
    %c0_4 = arith.constant 0 : index
    %c0_5 = arith.constant 0 : index
    %3 = vector.load %arg3[%c0_4, %c0_5] : memref<1x32xf32, #tpu.memory_space<vmem>>, vector<1x32xf32>
    %cst = arith.constant dense<0.000000e+00> : vector<8xf32>
    %4 = vector.multi_reduction <add>, %1, %cst [1] : vector<8x32xf32> to vector<8xf32>
    %5 = vector.shape_cast %4 : vector<8xf32> to vector<8x1xf32>
    %cst_6 = arith.constant 3.200000e+01 : f32
    %6 = vector.broadcast %cst_6 : f32 to vector<8x1xf32>
    %7 = arith.divf %5, %6 : vector<8x1xf32>
    %8 = vector.broadcast %7 : vector<8x1xf32> to vector<8x32xf32>
    %9 = arith.subf %1, %8 : vector<8x32xf32>
    %10 = arith.mulf %9, %9 : vector<8x32xf32>
    %cst_7 = arith.constant dense<0.000000e+00> : vector<8xf32>
    %11 = vector.multi_reduction <add>, %10, %cst_7 [1] : vector<8x32xf32> to vector<8xf32>
    %12 = vector.shape_cast %11 : vector<8xf32> to vector<8x1xf32>
    %cst_8 = arith.constant 3.200000e+01 : f32
    %13 = vector.broadcast %cst_8 : f32 to vector<8x1xf32>
    %14 = arith.divf %12, %13 : vector<8x1xf32>
    %cst_9 = arith.constant 9.99999974E-6 : f32
    %15 = vector.broadcast %cst_9 : f32 to vector<8x1xf32>
    %16 = arith.addf %14, %15 : vector<8x1xf32>
    %17 = math.rsqrt %16 : vector<8x1xf32>
    %18 = vector.broadcast %17 : vector<8x1xf32> to vector<8x32xf32>
    %19 = arith.mulf %9, %18 : vector<8x32xf32>
    %20 = vector.broadcast %2 : vector<1x32xf32> to vector<8x32xf32>
    %21 = arith.mulf %19, %20 : vector<8x32xf32>
    %22 = vector.broadcast %3 : vector<1x32xf32> to vector<8x32xf32>
    %23 = arith.addf %21, %22 : vector<8x32xf32>
    %c0_10 = arith.constant 0 : index
    %c0_11 = arith.constant 0 : index
    %c0_12 = arith.constant 0 : index
    %24 = vector.load %arg4[%c0_10, %c0_11, %c0_12] : memref<1x8x32xf32, #tpu.memory_space<vmem>>, vector<1x8x32xf32>
    %25 = vector.shape_cast %24 : vector<1x8x32xf32> to vector<8x32xf32>
    %26 = vector.shape_cast %23 : vector<8x32xf32> to vector<1x8x32xf32>
    tpu.vector_store %arg4[%c0_10, %c0_11, %c0_12], %26 {strides = array<i32>} : memref<1x8x32xf32, #tpu.memory_space<vmem>>, vector<1x8x32xf32>,
    return
  }
  func.func @transform_0(%arg0: i32) -> (i32, i32, i32) {
    %c0_i32 = arith.constant 0 : i32
    %c0_i32_0 = arith.constant 0 : i32
    %c0_i32_1 = arith.constant 0 : i32
    return %arg0, %c0_i32, %c0_i32_0 : i32, i32, i32
  }
  func.func @transform_1(%arg0: i32) -> (i32, i32) {
    %c0_i32 = arith.constant 0 : i32
    %c0_i32_0 = arith.constant 0 : i32
    %c0_i32_1 = arith.constant 0 : i32
    return %c0_i32, %c0_i32_0 : i32, i32
  }
  func.func @transform_2(%arg0: i32) -> (i32, i32) {
    %c0_i32 = arith.constant 0 : i32
    %c0_i32_0 = arith.constant 0 : i32
    %c0_i32_1 = arith.constant 0 : i32
    return %c0_i32, %c0_i32_0 : i32, i32
  }
  func.func @transform_3(%arg0: i32) -> (i32, i32, i32) {
    %c0_i32 = arith.constant 0 : i32
    %c0_i32_0 = arith.constant 0 : i32
    %c0_i32_1 = arith.constant 0 : i32
    return %arg0, %c0_i32, %c0_i32_0 : i32, i32, i32
  }
}

module attributes {stable_mosaic.version = 11 : i64} {
  func.func @_encoder_layer_kernel(%arg0: i32, %arg1: memref<1x8x32xf32, #tpu.memory_space<vmem>>, %arg2: memref<1x1x8xf32, #tpu.memory_space<vmem>>, %arg3: memref<32x96xbf16, #tpu.memory_space<vmem>>, %arg4: memref<1x96xf32, #tpu.memory_space<vmem>>, %arg5: memref<4x8x32xbf16, #tpu.memory_space<vmem>>, %arg6: memref<1x32xf32, #tpu.memory_space<vmem>>, %arg7: memref<1x32xf32, #tpu.memory_space<vmem>>, %arg8: memref<1x32xf32, #tpu.memory_space<vmem>>, %arg9: memref<32x64xbf16, #tpu.memory_space<vmem>>, %arg10: memref<1x64xf32, #tpu.memory_space<vmem>>, %arg11: memref<64x32xbf16, #tpu.memory_space<vmem>>, %arg12: memref<1x32xf32, #tpu.memory_space<vmem>>, %arg13: memref<1x32xf32, #tpu.memory_space<vmem>>, %arg14: memref<1x32xf32, #tpu.memory_space<vmem>>, %arg15: memref<1x8x32xf32, #tpu.memory_space<vmem>>) attributes {dimension_semantics = [#tpu.dimension_semantics<parallel>], iteration_bounds = array<i64: 2>, scalar_prefetch = 0 : i64, scratch_operands = 0 : i64, tpu.core_type = #tpu.core_type<tc>, window_params = [{transform_indices = @transform_0, window_bounds = array<i64: 1, 8, 32>}, {transform_indices = @transform_1, window_bounds = array<i64: 1, 1, 8>}, {pipeline_mode = #tpu.pipeline_mode<synchronous>, transform_indices = @transform_2, window_bounds = array<i64: 32, 96>}, {pipeline_mode = #tpu.pipeline_mode<synchronous>, transform_indices = @transform_3, window_bounds = array<i64: 1, 96>}, {pipeline_mode = #tpu.pipeline_mode<synchronous>, transform_indices = @transform_4, window_bounds = array<i64: 4, 8, 32>}, {pipeline_mode = #tpu.pipeline_mode<synchronous>, transform_indices = @transform_5, window_bounds = array<i64: 1, 32>}, {pipeline_mode = #tpu.pipeline_mode<synchronous>, transform_indices = @transform_6, window_bounds = array<i64: 1, 32>}, {pipeline_mode = #tpu.pipeline_mode<synchronous>, transform_indices = @transform_7, window_bounds = array<i64: 1, 32>}, {pipeline_mode = #tpu.pipeline_mode<synchronous>, transform_indices = @transform_8, window_bounds = array<i64: 32, 64>}, {pipeline_mode = #tpu.pipeline_mode<synchronous>, transform_indices = @transform_9, window_bounds = array<i64: 1, 64>}, {pipeline_mode = #tpu.pipeline_mode<synchronous>, transform_indices = @transform_10, window_bounds = array<i64: 64, 32>}, {pipeline_mode = #tpu.pipeline_mode<synchronous>, transform_indices = @transform_11, window_bounds = array<i64: 1, 32>}, {pipeline_mode = #tpu.pipeline_mode<synchronous>, transform_indices = @transform_12, window_bounds = array<i64: 1, 32>}, {pipeline_mode = #tpu.pipeline_mode<synchronous>, transform_indices = @transform_13, window_bounds = array<i64: 1, 32>}, {transform_indices = @transform_14, window_bounds = array<i64: 1, 8, 32>}]} {
    %c0 = arith.constant 0 : index
    %c0_0 = arith.constant 0 : index
    %c0_1 = arith.constant 0 : index
    %0 = vector.load %arg1[%c0, %c0_0, %c0_1] : memref<1x8x32xf32, #tpu.memory_space<vmem>>, vector<1x8x32xf32>
    %1 = vector.shape_cast %0 : vector<1x8x32xf32> to vector<8x32xf32>
    %c0_2 = arith.constant 0 : index
    %c0_3 = arith.constant 0 : index
    %c0_4 = arith.constant 0 : index
    %2 = vector.load %arg2[%c0_2, %c0_3, %c0_4] : memref<1x1x8xf32, #tpu.memory_space<vmem>>, vector<1x1x8xf32>
    %3 = vector.shape_cast %2 : vector<1x1x8xf32> to vector<1x8xf32>
    %cst = arith.constant 1.000000e+00 : f32
    %4 = vector.broadcast %cst : f32 to vector<1x8xf32>
    %5 = arith.subf %4, %3 : vector<1x8xf32>
    %cst_5 = arith.constant -1.000000e+09 : f32
    %6 = vector.broadcast %cst_5 : f32 to vector<1x8xf32>
    %7 = arith.mulf %5, %6 : vector<1x8xf32>
    %8 = arith.truncf %1 : vector<8x32xf32> to vector<8x32xbf16>
    %c0_6 = arith.constant 0 : index
    %c0_7 = arith.constant 0 : index
    %9 = vector.load %arg3[%c0_6, %c0_7] : memref<32x96xbf16, #tpu.memory_space<vmem>>, vector<32x96xbf16>
    %cst_8 = arith.constant dense<0.000000e+00> : vector<8x96xf32>
    %10 = tpu.matmul %8, %9, %cst_8 {dimension_numbers = #tpu.dot_dimension_numbers<[1], [0], [0], [1], [0, 0, 1, 1], [], []>} : vector<8x32xbf16>, vector<32x96xbf16>, vector<8x96xf32> -> vector<8x96xf32>
    %c0_9 = arith.constant 0 : index
    %c0_10 = arith.constant 0 : index
    %11 = vector.load %arg4[%c0_9, %c0_10] : memref<1x96xf32, #tpu.memory_space<vmem>>, vector<1x96xf32>
    %12 = vector.broadcast %11 : vector<1x96xf32> to vector<8x96xf32>
    %13 = arith.addf %10, %12 : vector<8x96xf32>
    %14 = vector.extract_strided_slice %13 {offsets = [0, 0], sizes = [8, 32], strides = [1, 1]} : vector<8x96xf32> to vector<8x32xf32>
    %15 = vector.extract_strided_slice %13 {offsets = [0, 32], sizes = [8, 32], strides = [1, 1]} : vector<8x96xf32> to vector<8x32xf32>
    %16 = vector.extract_strided_slice %13 {offsets = [0, 64], sizes = [8, 32], strides = [1, 1]} : vector<8x96xf32> to vector<8x32xf32>
    %c0_11 = arith.constant 0 : index
    %c0_12 = arith.constant 0 : index
    %17 = vector.load %arg6[%c0_11, %c0_12] : memref<1x32xf32, #tpu.memory_space<vmem>>, vector<1x32xf32>
    %18 = vector.extract_strided_slice %14 {offsets = [0, 0], sizes = [8, 8], strides = [1, 1]} : vector<8x32xf32> to vector<8x8xf32>
    %19 = arith.truncf %18 : vector<8x8xf32> to vector<8x8xbf16>
    %20 = vector.extract_strided_slice %15 {offsets = [0, 0], sizes = [8, 8], strides = [1, 1]} : vector<8x32xf32> to vector<8x8xf32>
    %21 = arith.truncf %20 : vector<8x8xf32> to vector<8x8xbf16>
    %22 = vector.extract_strided_slice %16 {offsets = [0, 0], sizes = [8, 8], strides = [1, 1]} : vector<8x32xf32> to vector<8x8xf32>
    %23 = arith.truncf %22 : vector<8x8xf32> to vector<8x8xbf16>
    %cst_13 = arith.constant dense<0.000000e+00> : vector<8x8xf32>
    %24 = tpu.matmul %19, %21, %cst_13 {dimension_numbers = #tpu.dot_dimension_numbers<[1], [1], [0], [0], [0, 0, 1, 0], [], []>} : vector<8x8xbf16>, vector<8x8xbf16>, vector<8x8xf32> -> vector<8x8xf32>
    %cst_14 = arith.constant 0.353553385 : f32
    %25 = vector.broadcast %cst_14 : f32 to vector<8x8xf32>
    %26 = arith.mulf %24, %25 : vector<8x8xf32>
    %27 = vector.broadcast %7 : vector<1x8xf32> to vector<8x8xf32>
    %28 = arith.addf %26, %27 : vector<8x8xf32>
    %cst_15 = arith.constant dense<0xFF800000> : vector<8xf32>
    %29 = vector.multi_reduction <maximumf>, %28, %cst_15 [1] : vector<8x8xf32> to vector<8xf32>
    %30 = vector.shape_cast %29 : vector<8xf32> to vector<8x1xf32>
    %31 = vector.broadcast %30 : vector<8x1xf32> to vector<8x8xf32>
    %32 = arith.subf %28, %31 : vector<8x8xf32>
    %33 = math.exp %32 : vector<8x8xf32>
    %cst_16 = arith.constant dense<0.000000e+00> : vector<8xf32>
    %34 = vector.multi_reduction <add>, %33, %cst_16 [1] : vector<8x8xf32> to vector<8xf32>
    %35 = vector.shape_cast %34 : vector<8xf32> to vector<8x1xf32>
    %36 = tpu.reciprocal %35 {approx = true} : vector<8x1xf32> -> vector<8x1xf32>
    %37 = vector.broadcast %36 : vector<8x1xf32> to vector<8x8xf32>
    %38 = arith.mulf %33, %37 : vector<8x8xf32>
    %39 = arith.truncf %38 : vector<8x8xf32> to vector<8x8xbf16>
    %cst_17 = arith.constant dense<0.000000e+00> : vector<8x8xf32>
    %40 = tpu.matmul %39, %23, %cst_17 {dimension_numbers = #tpu.dot_dimension_numbers<[1], [0], [0], [1], [0, 0, 1, 1], [], []>} : vector<8x8xbf16>, vector<8x8xbf16>, vector<8x8xf32> -> vector<8x8xf32>
    %41 = arith.truncf %40 : vector<8x8xf32> to vector<8x8xbf16>
    %c0_18 = arith.constant 0 : index
    %c0_19 = arith.constant 0 : index
    %c0_20 = arith.constant 0 : index
    %42 = vector.load %arg5[%c0_18, %c0_19, %c0_20] : memref<4x8x32xbf16, #tpu.memory_space<vmem>>, vector<1x8x32xbf16>
    %43 = vector.shape_cast %42 : vector<1x8x32xbf16> to vector<8x32xbf16>
    %cst_21 = arith.constant dense<0.000000e+00> : vector<8x32xf32>
    %44 = tpu.matmul %41, %43, %cst_21 {dimension_numbers = #tpu.dot_dimension_numbers<[1], [0], [0], [1], [0, 0, 1, 1], [], []>} : vector<8x8xbf16>, vector<8x32xbf16>, vector<8x32xf32> -> vector<8x32xf32>
    %45 = vector.broadcast %17 : vector<1x32xf32> to vector<8x32xf32>
    %46 = arith.addf %45, %44 : vector<8x32xf32>
    %47 = vector.extract_strided_slice %14 {offsets = [0, 8], sizes = [8, 8], strides = [1, 1]} : vector<8x32xf32> to vector<8x8xf32>
    %48 = arith.truncf %47 : vector<8x8xf32> to vector<8x8xbf16>
    %49 = vector.extract_strided_slice %15 {offsets = [0, 8], sizes = [8, 8], strides = [1, 1]} : vector<8x32xf32> to vector<8x8xf32>
    %50 = arith.truncf %49 : vector<8x8xf32> to vector<8x8xbf16>
    %51 = vector.extract_strided_slice %16 {offsets = [0, 8], sizes = [8, 8], strides = [1, 1]} : vector<8x32xf32> to vector<8x8xf32>
    %52 = arith.truncf %51 : vector<8x8xf32> to vector<8x8xbf16>
    %cst_22 = arith.constant dense<0.000000e+00> : vector<8x8xf32>
    %53 = tpu.matmul %48, %50, %cst_22 {dimension_numbers = #tpu.dot_dimension_numbers<[1], [1], [0], [0], [0, 0, 1, 0], [], []>} : vector<8x8xbf16>, vector<8x8xbf16>, vector<8x8xf32> -> vector<8x8xf32>
    %cst_23 = arith.constant 0.353553385 : f32
    %54 = vector.broadcast %cst_23 : f32 to vector<8x8xf32>
    %55 = arith.mulf %53, %54 : vector<8x8xf32>
    %56 = vector.broadcast %7 : vector<1x8xf32> to vector<8x8xf32>
    %57 = arith.addf %55, %56 : vector<8x8xf32>
    %cst_24 = arith.constant dense<0xFF800000> : vector<8xf32>
    %58 = vector.multi_reduction <maximumf>, %57, %cst_24 [1] : vector<8x8xf32> to vector<8xf32>
    %59 = vector.shape_cast %58 : vector<8xf32> to vector<8x1xf32>
    %60 = vector.broadcast %59 : vector<8x1xf32> to vector<8x8xf32>
    %61 = arith.subf %57, %60 : vector<8x8xf32>
    %62 = math.exp %61 : vector<8x8xf32>
    %cst_25 = arith.constant dense<0.000000e+00> : vector<8xf32>
    %63 = vector.multi_reduction <add>, %62, %cst_25 [1] : vector<8x8xf32> to vector<8xf32>
    %64 = vector.shape_cast %63 : vector<8xf32> to vector<8x1xf32>
    %65 = tpu.reciprocal %64 {approx = true} : vector<8x1xf32> -> vector<8x1xf32>
    %66 = vector.broadcast %65 : vector<8x1xf32> to vector<8x8xf32>
    %67 = arith.mulf %62, %66 : vector<8x8xf32>
    %68 = arith.truncf %67 : vector<8x8xf32> to vector<8x8xbf16>
    %cst_26 = arith.constant dense<0.000000e+00> : vector<8x8xf32>
    %69 = tpu.matmul %68, %52, %cst_26 {dimension_numbers = #tpu.dot_dimension_numbers<[1], [0], [0], [1], [0, 0, 1, 1], [], []>} : vector<8x8xbf16>, vector<8x8xbf16>, vector<8x8xf32> -> vector<8x8xf32>
    %70 = arith.truncf %69 : vector<8x8xf32> to vector<8x8xbf16>
    %c1 = arith.constant 1 : index
    %c0_27 = arith.constant 0 : index
    %c0_28 = arith.constant 0 : index
    %71 = vector.load %arg5[%c1, %c0_27, %c0_28] : memref<4x8x32xbf16, #tpu.memory_space<vmem>>, vector<1x8x32xbf16>
    %72 = vector.shape_cast %71 : vector<1x8x32xbf16> to vector<8x32xbf16>
    %cst_29 = arith.constant dense<0.000000e+00> : vector<8x32xf32>
    %73 = tpu.matmul %70, %72, %cst_29 {dimension_numbers = #tpu.dot_dimension_numbers<[1], [0], [0], [1], [0, 0, 1, 1], [], []>} : vector<8x8xbf16>, vector<8x32xbf16>, vector<8x32xf32> -> vector<8x32xf32>
    %74 = arith.addf %46, %73 : vector<8x32xf32>
    %75 = vector.extract_strided_slice %14 {offsets = [0, 16], sizes = [8, 8], strides = [1, 1]} : vector<8x32xf32> to vector<8x8xf32>
    %76 = arith.truncf %75 : vector<8x8xf32> to vector<8x8xbf16>
    %77 = vector.extract_strided_slice %15 {offsets = [0, 16], sizes = [8, 8], strides = [1, 1]} : vector<8x32xf32> to vector<8x8xf32>
    %78 = arith.truncf %77 : vector<8x8xf32> to vector<8x8xbf16>
    %79 = vector.extract_strided_slice %16 {offsets = [0, 16], sizes = [8, 8], strides = [1, 1]} : vector<8x32xf32> to vector<8x8xf32>
    %80 = arith.truncf %79 : vector<8x8xf32> to vector<8x8xbf16>
    %cst_30 = arith.constant dense<0.000000e+00> : vector<8x8xf32>
    %81 = tpu.matmul %76, %78, %cst_30 {dimension_numbers = #tpu.dot_dimension_numbers<[1], [1], [0], [0], [0, 0, 1, 0], [], []>} : vector<8x8xbf16>, vector<8x8xbf16>, vector<8x8xf32> -> vector<8x8xf32>
    %cst_31 = arith.constant 0.353553385 : f32
    %82 = vector.broadcast %cst_31 : f32 to vector<8x8xf32>
    %83 = arith.mulf %81, %82 : vector<8x8xf32>
    %84 = vector.broadcast %7 : vector<1x8xf32> to vector<8x8xf32>
    %85 = arith.addf %83, %84 : vector<8x8xf32>
    %cst_32 = arith.constant dense<0xFF800000> : vector<8xf32>
    %86 = vector.multi_reduction <maximumf>, %85, %cst_32 [1] : vector<8x8xf32> to vector<8xf32>
    %87 = vector.shape_cast %86 : vector<8xf32> to vector<8x1xf32>
    %88 = vector.broadcast %87 : vector<8x1xf32> to vector<8x8xf32>
    %89 = arith.subf %85, %88 : vector<8x8xf32>
    %90 = math.exp %89 : vector<8x8xf32>
    %cst_33 = arith.constant dense<0.000000e+00> : vector<8xf32>
    %91 = vector.multi_reduction <add>, %90, %cst_33 [1] : vector<8x8xf32> to vector<8xf32>
    %92 = vector.shape_cast %91 : vector<8xf32> to vector<8x1xf32>
    %93 = tpu.reciprocal %92 {approx = true} : vector<8x1xf32> -> vector<8x1xf32>
    %94 = vector.broadcast %93 : vector<8x1xf32> to vector<8x8xf32>
    %95 = arith.mulf %90, %94 : vector<8x8xf32>
    %96 = arith.truncf %95 : vector<8x8xf32> to vector<8x8xbf16>
    %cst_34 = arith.constant dense<0.000000e+00> : vector<8x8xf32>
    %97 = tpu.matmul %96, %80, %cst_34 {dimension_numbers = #tpu.dot_dimension_numbers<[1], [0], [0], [1], [0, 0, 1, 1], [], []>} : vector<8x8xbf16>, vector<8x8xbf16>, vector<8x8xf32> -> vector<8x8xf32>
    %98 = arith.truncf %97 : vector<8x8xf32> to vector<8x8xbf16>
    %c2 = arith.constant 2 : index
    %c0_35 = arith.constant 0 : index
    %c0_36 = arith.constant 0 : index
    %99 = vector.load %arg5[%c2, %c0_35, %c0_36] : memref<4x8x32xbf16, #tpu.memory_space<vmem>>, vector<1x8x32xbf16>
    %100 = vector.shape_cast %99 : vector<1x8x32xbf16> to vector<8x32xbf16>
    %cst_37 = arith.constant dense<0.000000e+00> : vector<8x32xf32>
    %101 = tpu.matmul %98, %100, %cst_37 {dimension_numbers = #tpu.dot_dimension_numbers<[1], [0], [0], [1], [0, 0, 1, 1], [], []>} : vector<8x8xbf16>, vector<8x32xbf16>, vector<8x32xf32> -> vector<8x32xf32>
    %102 = arith.addf %74, %101 : vector<8x32xf32>
    %103 = vector.extract_strided_slice %14 {offsets = [0, 24], sizes = [8, 8], strides = [1, 1]} : vector<8x32xf32> to vector<8x8xf32>
    %104 = arith.truncf %103 : vector<8x8xf32> to vector<8x8xbf16>
    %105 = vector.extract_strided_slice %15 {offsets = [0, 24], sizes = [8, 8], strides = [1, 1]} : vector<8x32xf32> to vector<8x8xf32>
    %106 = arith.truncf %105 : vector<8x8xf32> to vector<8x8xbf16>
    %107 = vector.extract_strided_slice %16 {offsets = [0, 24], sizes = [8, 8], strides = [1, 1]} : vector<8x32xf32> to vector<8x8xf32>
    %108 = arith.truncf %107 : vector<8x8xf32> to vector<8x8xbf16>
    %cst_38 = arith.constant dense<0.000000e+00> : vector<8x8xf32>
    %109 = tpu.matmul %104, %106, %cst_38 {dimension_numbers = #tpu.dot_dimension_numbers<[1], [1], [0], [0], [0, 0, 1, 0], [], []>} : vector<8x8xbf16>, vector<8x8xbf16>, vector<8x8xf32> -> vector<8x8xf32>
    %cst_39 = arith.constant 0.353553385 : f32
    %110 = vector.broadcast %cst_39 : f32 to vector<8x8xf32>
    %111 = arith.mulf %109, %110 : vector<8x8xf32>
    %112 = vector.broadcast %7 : vector<1x8xf32> to vector<8x8xf32>
    %113 = arith.addf %111, %112 : vector<8x8xf32>
    %cst_40 = arith.constant dense<0xFF800000> : vector<8xf32>
    %114 = vector.multi_reduction <maximumf>, %113, %cst_40 [1] : vector<8x8xf32> to vector<8xf32>
    %115 = vector.shape_cast %114 : vector<8xf32> to vector<8x1xf32>
    %116 = vector.broadcast %115 : vector<8x1xf32> to vector<8x8xf32>
    %117 = arith.subf %113, %116 : vector<8x8xf32>
    %118 = math.exp %117 : vector<8x8xf32>
    %cst_41 = arith.constant dense<0.000000e+00> : vector<8xf32>
    %119 = vector.multi_reduction <add>, %118, %cst_41 [1] : vector<8x8xf32> to vector<8xf32>
    %120 = vector.shape_cast %119 : vector<8xf32> to vector<8x1xf32>
    %121 = tpu.reciprocal %120 {approx = true} : vector<8x1xf32> -> vector<8x1xf32>
    %122 = vector.broadcast %121 : vector<8x1xf32> to vector<8x8xf32>
    %123 = arith.mulf %118, %122 : vector<8x8xf32>
    %124 = arith.truncf %123 : vector<8x8xf32> to vector<8x8xbf16>
    %cst_42 = arith.constant dense<0.000000e+00> : vector<8x8xf32>
    %125 = tpu.matmul %124, %108, %cst_42 {dimension_numbers = #tpu.dot_dimension_numbers<[1], [0], [0], [1], [0, 0, 1, 1], [], []>} : vector<8x8xbf16>, vector<8x8xbf16>, vector<8x8xf32> -> vector<8x8xf32>
    %126 = arith.truncf %125 : vector<8x8xf32> to vector<8x8xbf16>
    %c3 = arith.constant 3 : index
    %c0_43 = arith.constant 0 : index
    %c0_44 = arith.constant 0 : index
    %127 = vector.load %arg5[%c3, %c0_43, %c0_44] : memref<4x8x32xbf16, #tpu.memory_space<vmem>>, vector<1x8x32xbf16>
    %128 = vector.shape_cast %127 : vector<1x8x32xbf16> to vector<8x32xbf16>
    %cst_45 = arith.constant dense<0.000000e+00> : vector<8x32xf32>
    %129 = tpu.matmul %126, %128, %cst_45 {dimension_numbers = #tpu.dot_dimension_numbers<[1], [0], [0], [1], [0, 0, 1, 1], [], []>} : vector<8x8xbf16>, vector<8x32xbf16>, vector<8x32xf32> -> vector<8x32xf32>
    %130 = arith.addf %102, %129 : vector<8x32xf32>
    %131 = arith.addf %130, %1 : vector<8x32xf32>
    %c0_46 = arith.constant 0 : index
    %c0_47 = arith.constant 0 : index
    %132 = vector.load %arg7[%c0_46, %c0_47] : memref<1x32xf32, #tpu.memory_space<vmem>>, vector<1x32xf32>
    %c0_48 = arith.constant 0 : index
    %c0_49 = arith.constant 0 : index
    %133 = vector.load %arg8[%c0_48, %c0_49] : memref<1x32xf32, #tpu.memory_space<vmem>>, vector<1x32xf32>
    %cst_50 = arith.constant dense<0.000000e+00> : vector<8xf32>
    %134 = vector.multi_reduction <add>, %131, %cst_50 [1] : vector<8x32xf32> to vector<8xf32>
    %135 = vector.shape_cast %134 : vector<8xf32> to vector<8x1xf32>
    %cst_51 = arith.constant 3.200000e+01 : f32
    %136 = vector.broadcast %cst_51 : f32 to vector<8x1xf32>
    %137 = arith.divf %135, %136 : vector<8x1xf32>
    %138 = vector.broadcast %137 : vector<8x1xf32> to vector<8x32xf32>
    %139 = arith.subf %131, %138 : vector<8x32xf32>
    %140 = arith.mulf %139, %139 : vector<8x32xf32>
    %cst_52 = arith.constant dense<0.000000e+00> : vector<8xf32>
    %141 = vector.multi_reduction <add>, %140, %cst_52 [1] : vector<8x32xf32> to vector<8xf32>
    %142 = vector.shape_cast %141 : vector<8xf32> to vector<8x1xf32>
    %cst_53 = arith.constant 3.200000e+01 : f32
    %143 = vector.broadcast %cst_53 : f32 to vector<8x1xf32>
    %144 = arith.divf %142, %143 : vector<8x1xf32>
    %cst_54 = arith.constant 9.99999974E-6 : f32
    %145 = vector.broadcast %cst_54 : f32 to vector<8x1xf32>
    %146 = arith.addf %144, %145 : vector<8x1xf32>
    %147 = math.rsqrt %146 : vector<8x1xf32>
    %148 = vector.broadcast %147 : vector<8x1xf32> to vector<8x32xf32>
    %149 = arith.mulf %139, %148 : vector<8x32xf32>
    %150 = vector.broadcast %132 : vector<1x32xf32> to vector<8x32xf32>
    %151 = arith.mulf %149, %150 : vector<8x32xf32>
    %152 = vector.broadcast %133 : vector<1x32xf32> to vector<8x32xf32>
    %153 = arith.addf %151, %152 : vector<8x32xf32>
    %154 = arith.truncf %153 : vector<8x32xf32> to vector<8x32xbf16>
    %c0_55 = arith.constant 0 : index
    %c0_56 = arith.constant 0 : index
    %155 = vector.load %arg9[%c0_55, %c0_56] : memref<32x64xbf16, #tpu.memory_space<vmem>>, vector<32x64xbf16>
    %cst_57 = arith.constant dense<0.000000e+00> : vector<8x64xf32>
    %156 = tpu.matmul %154, %155, %cst_57 {dimension_numbers = #tpu.dot_dimension_numbers<[1], [0], [0], [1], [0, 0, 1, 1], [], []>} : vector<8x32xbf16>, vector<32x64xbf16>, vector<8x64xf32> -> vector<8x64xf32>
    %c0_58 = arith.constant 0 : index
    %c0_59 = arith.constant 0 : index
    %157 = vector.load %arg10[%c0_58, %c0_59] : memref<1x64xf32, #tpu.memory_space<vmem>>, vector<1x64xf32>
    %158 = vector.broadcast %157 : vector<1x64xf32> to vector<8x64xf32>
    %159 = arith.addf %156, %158 : vector<8x64xf32>
    %cst_60 = arith.constant 5.000000e-01 : f32
    %160 = vector.broadcast %cst_60 : f32 to vector<8x64xf32>
    %161 = arith.mulf %160, %159 : vector<8x64xf32>
    %cst_61 = arith.constant 0.707106769 : f32
    %162 = vector.broadcast %cst_61 : f32 to vector<8x64xf32>
    %163 = arith.mulf %159, %162 : vector<8x64xf32>
    %164 = math.erf %163 : vector<8x64xf32>
    %cst_62 = arith.constant 1.000000e+00 : f32
    %165 = vector.broadcast %cst_62 : f32 to vector<8x64xf32>
    %166 = arith.addf %165, %164 : vector<8x64xf32>
    %167 = arith.mulf %161, %166 : vector<8x64xf32>
    %168 = arith.truncf %167 : vector<8x64xf32> to vector<8x64xbf16>
    %c0_63 = arith.constant 0 : index
    %c0_64 = arith.constant 0 : index
    %169 = vector.load %arg11[%c0_63, %c0_64] : memref<64x32xbf16, #tpu.memory_space<vmem>>, vector<64x32xbf16>
    %cst_65 = arith.constant dense<0.000000e+00> : vector<8x32xf32>
    %170 = tpu.matmul %168, %169, %cst_65 {dimension_numbers = #tpu.dot_dimension_numbers<[1], [0], [0], [1], [0, 0, 1, 1], [], []>} : vector<8x64xbf16>, vector<64x32xbf16>, vector<8x32xf32> -> vector<8x32xf32>
    %c0_66 = arith.constant 0 : index
    %c0_67 = arith.constant 0 : index
    %171 = vector.load %arg12[%c0_66, %c0_67] : memref<1x32xf32, #tpu.memory_space<vmem>>, vector<1x32xf32>
    %172 = vector.broadcast %171 : vector<1x32xf32> to vector<8x32xf32>
    %173 = arith.addf %170, %172 : vector<8x32xf32>
    %174 = arith.addf %173, %153 : vector<8x32xf32>
    %c0_68 = arith.constant 0 : index
    %c0_69 = arith.constant 0 : index
    %175 = vector.load %arg13[%c0_68, %c0_69] : memref<1x32xf32, #tpu.memory_space<vmem>>, vector<1x32xf32>
    %c0_70 = arith.constant 0 : index
    %c0_71 = arith.constant 0 : index
    %176 = vector.load %arg14[%c0_70, %c0_71] : memref<1x32xf32, #tpu.memory_space<vmem>>, vector<1x32xf32>
    %cst_72 = arith.constant dense<0.000000e+00> : vector<8xf32>
    %177 = vector.multi_reduction <add>, %174, %cst_72 [1] : vector<8x32xf32> to vector<8xf32>
    %178 = vector.shape_cast %177 : vector<8xf32> to vector<8x1xf32>
    %cst_73 = arith.constant 3.200000e+01 : f32
    %179 = vector.broadcast %cst_73 : f32 to vector<8x1xf32>
    %180 = arith.divf %178, %179 : vector<8x1xf32>
    %181 = vector.broadcast %180 : vector<8x1xf32> to vector<8x32xf32>
    %182 = arith.subf %174, %181 : vector<8x32xf32>
    %183 = arith.mulf %182, %182 : vector<8x32xf32>
    %cst_74 = arith.constant dense<0.000000e+00> : vector<8xf32>
    %184 = vector.multi_reduction <add>, %183, %cst_74 [1] : vector<8x32xf32> to vector<8xf32>
    %185 = vector.shape_cast %184 : vector<8xf32> to vector<8x1xf32>
    %cst_75 = arith.constant 3.200000e+01 : f32
    %186 = vector.broadcast %cst_75 : f32 to vector<8x1xf32>
    %187 = arith.divf %185, %186 : vector<8x1xf32>
    %cst_76 = arith.constant 9.99999974E-6 : f32
    %188 = vector.broadcast %cst_76 : f32 to vector<8x1xf32>
    %189 = arith.addf %187, %188 : vector<8x1xf32>
    %190 = math.rsqrt %189 : vector<8x1xf32>
    %191 = vector.broadcast %190 : vector<8x1xf32> to vector<8x32xf32>
    %192 = arith.mulf %182, %191 : vector<8x32xf32>
    %193 = vector.broadcast %175 : vector<1x32xf32> to vector<8x32xf32>
    %194 = arith.mulf %192, %193 : vector<8x32xf32>
    %195 = vector.broadcast %176 : vector<1x32xf32> to vector<8x32xf32>
    %196 = arith.addf %194, %195 : vector<8x32xf32>
    %c0_77 = arith.constant 0 : index
    %c0_78 = arith.constant 0 : index
    %c0_79 = arith.constant 0 : index
    %197 = vector.load %arg15[%c0_77, %c0_78, %c0_79] : memref<1x8x32xf32, #tpu.memory_space<vmem>>, vector<1x8x32xf32>
    %198 = vector.shape_cast %197 : vector<1x8x32xf32> to vector<8x32xf32>
    %199 = vector.shape_cast %196 : vector<8x32xf32> to vector<1x8x32xf32>
    tpu.vector_store %arg15[%c0_77, %c0_78, %c0_79], %199 {strides = array<i32>} : memref<1x8x32xf32, #tpu.memory_space<vmem>>, vector<1x8x32xf32>,
    return
  }
  func.func @transform_0(%arg0: i32) -> (i32, i32, i32) {
    %c0_i32 = arith.constant 0 : i32
    %c0_i32_0 = arith.constant 0 : i32
    %c0_i32_1 = arith.constant 0 : i32
    return %arg0, %c0_i32, %c0_i32_0 : i32, i32, i32
  }
  func.func @transform_1(%arg0: i32) -> (i32, i32, i32) {
    %c0_i32 = arith.constant 0 : i32
    %c0_i32_0 = arith.constant 0 : i32
    %c0_i32_1 = arith.constant 0 : i32
    return %arg0, %c0_i32, %c0_i32_0 : i32, i32, i32
  }
  func.func @transform_2(%arg0: i32) -> (i32, i32) {
    %c0_i32 = arith.constant 0 : i32
    %c0_i32_0 = arith.constant 0 : i32
    %c0_i32_1 = arith.constant 0 : i32
    return %c0_i32, %c0_i32_0 : i32, i32
  }
  func.func @transform_3(%arg0: i32) -> (i32, i32) {
    %c0_i32 = arith.constant 0 : i32
    %c0_i32_0 = arith.constant 0 : i32
    %c0_i32_1 = arith.constant 0 : i32
    return %c0_i32, %c0_i32_0 : i32, i32
  }
  func.func @transform_4(%arg0: i32) -> (i32, i32, i32) {
    %c0_i32 = arith.constant 0 : i32
    %c0_i32_0 = arith.constant 0 : i32
    %c0_i32_1 = arith.constant 0 : i32
    %c0_i32_2 = arith.constant 0 : i32
    return %c0_i32, %c0_i32_0, %c0_i32_1 : i32, i32, i32
  }
  func.func @transform_5(%arg0: i32) -> (i32, i32) {
    %c0_i32 = arith.constant 0 : i32
    %c0_i32_0 = arith.constant 0 : i32
    %c0_i32_1 = arith.constant 0 : i32
    return %c0_i32, %c0_i32_0 : i32, i32
  }
  func.func @transform_6(%arg0: i32) -> (i32, i32) {
    %c0_i32 = arith.constant 0 : i32
    %c0_i32_0 = arith.constant 0 : i32
    %c0_i32_1 = arith.constant 0 : i32
    return %c0_i32, %c0_i32_0 : i32, i32
  }
  func.func @transform_7(%arg0: i32) -> (i32, i32) {
    %c0_i32 = arith.constant 0 : i32
    %c0_i32_0 = arith.constant 0 : i32
    %c0_i32_1 = arith.constant 0 : i32
    return %c0_i32, %c0_i32_0 : i32, i32
  }
  func.func @transform_8(%arg0: i32) -> (i32, i32) {
    %c0_i32 = arith.constant 0 : i32
    %c0_i32_0 = arith.constant 0 : i32
    %c0_i32_1 = arith.constant 0 : i32
    return %c0_i32, %c0_i32_0 : i32, i32
  }
  func.func @transform_9(%arg0: i32) -> (i32, i32) {
    %c0_i32 = arith.constant 0 : i32
    %c0_i32_0 = arith.constant 0 : i32
    %c0_i32_1 = arith.constant 0 : i32
    return %c0_i32, %c0_i32_0 : i32, i32
  }
  func.func @transform_10(%arg0: i32) -> (i32, i32) {
    %c0_i32 = arith.constant 0 : i32
    %c0_i32_0 = arith.constant 0 : i32
    %c0_i32_1 = arith.constant 0 : i32
    return %c0_i32, %c0_i32_0 : i32, i32
  }
  func.func @transform_11(%arg0: i32) -> (i32, i32) {
    %c0_i32 = arith.constant 0 : i32
    %c0_i32_0 = arith.constant 0 : i32
    %c0_i32_1 = arith.constant 0 : i32
    return %c0_i32, %c0_i32_0 : i32, i32
  }
  func.func @transform_12(%arg0: i32) -> (i32, i32) {
    %c0_i32 = arith.constant 0 : i32
    %c0_i32_0 = arith.constant 0 : i32
    %c0_i32_1 = arith.constant 0 : i32
    return %c0_i32, %c0_i32_0 : i32, i32
  }
  func.func @transform_13(%arg0: i32) -> (i32, i32) {
    %c0_i32 = arith.constant 0 : i32
    %c0_i32_0 = arith.constant 0 : i32
    %c0_i32_1 = arith.constant 0 : i32
    return %c0_i32, %c0_i32_0 : i32, i32
  }
  func.func @transform_14(%arg0: i32) -> (i32, i32, i32) {
    %c0_i32 = arith.constant 0 : i32
    %c0_i32_0 = arith.constant 0 : i32
    %c0_i32_1 = arith.constant 0 : i32
    return %arg0, %c0_i32, %c0_i32_0 : i32, i32, i32
  }
}

</mosaic_0001>

<llo_original>
// kernel: roberta_forward.3
$region0: #{roberta_forward.3}
  #allocation0 [shape = 'u32[]', space=smem, size = 0x4, offset = 0x4, fixed_abs, tag = 'smem constant byte address 0x4 - core index']
  #allocation1 [shape = 'u32[144,128]{1,0:T(1,128)}', space=vmem, size = 0x12000, scoped, tag = 'internal scratch']
  %s0 = inlined_call_operand.vmem [shape: f32[2,8,32], index: 0, kind: input, shape index: {}]
  %s1 = inlined_call_operand.vmem [shape: f32[1,32], index: 1, kind: input, shape index: {}]
  %s2 = inlined_call_operand.vmem [shape: f32[1,32], index: 2, kind: input, shape index: {}]
  %s3 = inlined_call_operand.vmem [shape: f32[2,8,32], index: 3, kind: output, shape index: {}]
  %s4 = sld [smem:[#allocation0]]
  $region45: #{roberta_forward.3} parent=0
    _
  %s6 = ssub.s32 1, %s4
  %s7 = scalar_select 0, %s6, %s4
  loop: start=0, step=1, limit=4
  $region2: #{roberta_forward.3} parent=0 // loop_pre_header
    _
  $region3: #{roberta_forward.3} parent=0 // loop_header
    %s9 = sphi 0, %s13
    %p10 = scmp.ge.s32.totalorder %s9, 4
    %s19 = sphi 0, %s21
    %s22 = sphi 0, %s19
    %s23 = sphi 0, %s22
    %s39 = sphi 0, %s23
    %s43 = sphi 0, %s43
    %s45 = sphi 0, %s43
    %s46 = sphi 0, %s45
    %s60 = sphi 0, %s46
    %s64 = sphi 0, %s64
    %s66 = sphi 0, %s64
    %s67 = sphi 0, %s66
    %s81 = sphi 0, %s67
    %s87 = sphi 0, %s89
    %s90 = sphi 0, %s87
    %s91 = sphi 0, %s90
    %s107 = sphi 0, %s91
  $region4: #{roberta_forward.3} parent=0 // loop_header_branch
    %12 = sbr.rel (%p10) target = $region8
  $region5: #{roberta_forward.3} parent=0 // loop_body
    %s14 = ssub.s32 %s9, 1
    %s15 = ssub.s32 %s9, 2
    %s16 = sadd.s32 %s9, 1
    %s17 = ssub.s32 %s9, %s16
    %p18 = scmp.eq.s32.totalorder %s17, 0
    %s20 = sadd.s32 %s19, 1
    %s21 = scalar_select %p18, %s19, %s20
    %p24 = pneg %p18
    %p25 = scmp.eq.s32.totalorder %s9, 1
    %p26 = por %p24, %p25
    %p27 = scmp.ne.s32.totalorder %s19, %s22
    %p28 = scmp.eq.s32.totalorder %s9, 0
    %p29 = por %p27, %p28
    %p30 = scmp.ne.s32.totalorder %s19, %s22
    %p31 = scmp.eq.s32.totalorder %s14, 1
    %p32 = por %p30, %p31
    %p33 = scmp.ne.s32.totalorder %s22, %s23
    %p34 = scmp.eq.s32.totalorder %s14, 0
    %p35 = por %p33, %p34
    %p36 = scmp.ne.s32.totalorder %s22, %s23
    %p37 = scmp.eq.s32.totalorder %s15, 1
    %p38 = por %p36, %p37
    %p40 = scmp.ne.s32.totalorder %s23, %s39
    %p41 = scmp.eq.s32.totalorder %s15, 0
    %p42 = por %p40, %p41
    %s44 = sadd.s32 %s43, 1
    %p47 = scmp.eq.s32.totalorder %s9, 1
    %p48 = scmp.ne.s32.totalorder %s43, %s45
    %p49 = scmp.eq.s32.totalorder %s9, 0
    %p50 = por %p48, %p49
    %p51 = scmp.ne.s32.totalorder %s43, %s45
    %p52 = scmp.eq.s32.totalorder %s14, 1
    %p53 = por %p51, %p52
    %p54 = scmp.ne.s32.totalorder %s45, %s46
    %p55 = scmp.eq.s32.totalorder %s14, 0
    %p56 = por %p54, %p55
    %p57 = scmp.ne.s32.totalorder %s45, %s46
    %p58 = scmp.eq.s32.totalorder %s15, 1
    %p59 = por %p57, %p58
    %p61 = scmp.ne.s32.totalorder %s46, %s60
    %p62 = scmp.eq.s32.totalorder %s15, 0
    %p63 = por %p61, %p62
    %s65 = sadd.s32 %s64, 1
    %p68 = scmp.eq.s32.totalorder %s9, 1
    %p69 = scmp.ne.s32.totalorder %s64, %s66
    %p70 = scmp.eq.s32.totalorder %s9, 0
    %p71 = por %p69, %p70
    %p72 = scmp.ne.s32.totalorder %s64, %s66
    %p73 = scmp.eq.s32.totalorder %s14, 1
    %p74 = por %p72, %p73
    %p75 = scmp.ne.s32.totalorder %s66, %s67
    %p76 = scmp.eq.s32.totalorder %s14, 0
    %p77 = por %p75, %p76
    %p78 = scmp.ne.s32.totalorder %s66, %s67
    %p79 = scmp.eq.s32.totalorder %s15, 1
    %p80 = por %p78, %p79
    %p82 = scmp.ne.s32.totalorder %s67, %s81
    %p83 = scmp.eq.s32.totalorder %s15, 0
    %p84 = por %p82, %p83
    %s85 = ssub.s32 %s9, %s16
    %p86 = scmp.eq.s32.totalorder %s85, 0
    %s88 = sadd.s32 %s87, 1
    %s89 = scalar_select %p86, %s87, %s88
    %p92 = pneg %p86
    %p93 = scmp.eq.s32.totalorder %s9, 1
    %p94 = por %p92, %p93
    %p95 = scmp.ne.s32.totalorder %s87, %s90
    %p96 = scmp.eq.s32.totalorder %s9, 0
    %p97 = por %p95, %p96
    %p98 = scmp.ne.s32.totalorder %s87, %s90
    %p99 = scmp.eq.s32.totalorder %s14, 1
    %p100 = por %p98, %p99
    %p101 = scmp.ne.s32.totalorder %s90, %s91
    %p102 = scmp.eq.s32.totalorder %s14, 0
    %p103 = por %p101, %p102
    %p104 = scmp.ne.s32.totalorder %s90, %s91
    %p105 = scmp.eq.s32.totalorder %s15, 1
    %p106 = por %p104, %p105
    %p108 = scmp.ne.s32.totalorder %s91, %s107
    %p109 = scmp.eq.s32.totalorder %s15, 0
    %p110 = por %p108, %p109
    %p111 = scmp.le.s32.totalorder 1, %s9
    %p112 = scmp.lt.s32.totalorder %s9, 3
    %p113 = pnand %p111, %p112
    %p114 = pneg %p113
    // Predicated region
    $region9: #{roberta_forward.3} parent=5 // pred_check
      _
    $region10: #{roberta_forward.3} parent=5 // pred_check_branch
      %116 = sbr.rel (%p113) target = $region12
    $region11: #{roberta_forward.3} parent=5 // pred_region
      %s117 = ssub.s32 %s9, 1
      // Predicated region
      $region13: #{roberta_forward.3} parent=11 // pred_check
        %p118 = pneg %p56
      $region14: #{roberta_forward.3} parent=11 // pred_check_branch
        %120 = sbr.rel (%p118) target = $region16
      $region15: #{roberta_forward.3} parent=11 // pred_region
        _
      $region16: #{roberta_forward.3} parent=11 // pred_fallthru
        _
      // Predicated region
      $region17: #{roberta_forward.3} parent=11 // pred_check
        %p121 = pneg %p77
      $region18: #{roberta_forward.3} parent=11 // pred_check_branch
        %123 = sbr.rel (%p121) target = $region20
      $region19: #{roberta_forward.3} parent=11 // pred_region
        _
      $region20: #{roberta_forward.3} parent=11 // pred_fallthru
        _
    $region12: #{roberta_forward.3} parent=5 // pred_fallthru
      _
    %p124 = scmp.lt.s32.totalorder %s9, 2
    // Predicated region
    $region21: #{roberta_forward.3} parent=5 // pred_check
      %p125 = pneg %p124
    $region22: #{roberta_forward.3} parent=5 // pred_check_branch
      %127 = sbr.rel (%p125) target = $region24
    $region23: #{roberta_forward.3} parent=5 // pred_region
      // Predicated region
      $region25: #{roberta_forward.3} parent=23 // pred_check
        %p128 = pneg %p29
      $region26: #{roberta_forward.3} parent=23 // pred_check_branch
        %130 = sbr.rel (%p128) target = $region28
      $region27: #{roberta_forward.3} parent=23 // pred_region
        %p131 = scmp.lt.s32.totalorder %s9, 1
        %s132 = scalar_select %p131, %s9, 1
        %s133 = smul.addr %s132, 8
        %s134 = scalar_lea.vmem %s0, %s133
      $region28: #{roberta_forward.3} parent=23 // pred_fallthru
        _
    $region24: #{roberta_forward.3} parent=5 // pred_fallthru
      _
    %p135 = scmp.le.s32.totalorder 1, %s9
    %p136 = scmp.lt.s32.totalorder %s9, 3
    %p137 = pnand %p135, %p136
    %p138 = pneg %p137
    // Predicated region
    $region29: #{roberta_forward.3} parent=5 // pred_check
      _
    $region30: #{roberta_forward.3} parent=5 // pred_check_branch
      %140 = sbr.rel (%p137) target = $region32
    $region31: #{roberta_forward.3} parent=5 // pred_region
      %s141 = ssub.s32 %s9, 1
      %p142 = scmp.lt.s32.totalorder %s14, 1
      %s143 = scalar_select %p142, %s14, 1
      %s144 = smul.addr %s143, 8
      %s145 = scalar_lea.vmem %s0, %s144
      %p146 = pneg %p35
      %p147 = pneg %p32
      %p148 = pneg %p56
      %p149 = pneg %p53
      %p150 = pneg %p77
      %p151 = pneg %p74
      %p152 = pneg %p103
      %p153 = pneg %p100
      %p154 = scmp.lt.s32.totalorder %s14, 1
      %s155 = scalar_select %p154, %s14, 1
      %s156 = smul.addr %s155, 8
      %s157 = scalar_lea.vmem %s3, %s156
      %p158 = scmp.lt.s32.totalorder %s14, 1
      %s159 = scalar_select %p158, %s14, 1
      %s160 = smul.addr %s159, 8
      %s161 = scalar_lea.vmem %s0, %s160
      %p162 = scmp.lt.s32.totalorder %s14, 1
      %s163 = scalar_select %p162, %s14, 1
      %s164 = smul.addr %s163, 8
      %s165 = scalar_lea.vmem %s3, %s164
      %v166 = vld [vmem:[%s161] sm:$0xff]
      %v167 = vld [vmem:[%s1] sm:$0x1]
      %v168 = vld [vmem:[%s2] sm:$0x1]
      %vm169 = vcmask 261120
      %v170 = vsel %vm169, %v166, 0.0
      %171 = vadd.xlane.f32.xlu0 %v170
      %v172 = vpop.xlane.xlu0 %171
      %v173 = vrcp.pop 32.0
      %v174 = vmul.f32 %v172, %v173
      %v175 = vsub.f32 %v166, %v174
      %v176 = vmul.f32 %v175, %v175
      %v177 = vsel %vm169, %v176, 0.0
      %178 = vadd.xlane.f32.xlu0 %v177
      %v179 = vpop.xlane.xlu0 %178
      %v180 = vmul.f32 %v179, %v173
      %v181 = vadd.f32 %v180, 1e-05
      %v182 = vrsqrt.pop %v181
      %v183 = vmul.f32 %v175, %v182
      %v185 = vlaneseq
      %v186 = vshrl.u32 %v185, 7
      %v187 = vsub.s32 0, %v186
      %v188 = vrot.slane %v167, %v187
      %v190 = vmul.f32 %v183, %v188
      %v192 = vlaneseq
      %v193 = vshrl.u32 %v192, 7
      %v194 = vsub.s32 0, %v193
      %v195 = vrot.slane %v168, %v194
      %v197 = vadd.f32 %v190, %v195
      %198 = vst.msk [vmem:[%s165] sm:$0xff] %vm169, %v197
      %p199 = scmp.lt.s32.totalorder %s14, 1
      %s200 = scalar_select %p199, %s14, 1
      %s201 = smul.addr %s200, 8
      %s202 = scalar_lea.vmem %s3, %s201
      // Predicated region
      $region33: #{roberta_forward.3} parent=31 // pred_check
        %p203 = pneg %p100
      $region34: #{roberta_forward.3} parent=31 // pred_check_branch
        %205 = sbr.rel (%p203) target = $region36
      $region35: #{roberta_forward.3} parent=31 // pred_region
        _
      $region36: #{roberta_forward.3} parent=31 // pred_fallthru
        _
    $region32: #{roberta_forward.3} parent=5 // pred_fallthru
      _
    %p206 = scmp.le.s32.totalorder 2, %s9
    // Predicated region
    $region37: #{roberta_forward.3} parent=5 // pred_check
      %p207 = pneg %p206
    $region38: #{roberta_forward.3} parent=5 // pred_check_branch
      %209 = sbr.rel (%p207) target = $region40
    $region39: #{roberta_forward.3} parent=5 // pred_region
      %s210 = ssub.s32 %s9, 2
      // Predicated region
      $region41: #{roberta_forward.3} parent=39 // pred_check
        %p211 = pneg %p106
      $region42: #{roberta_forward.3} parent=39 // pred_check_branch
        %213 = sbr.rel (%p211) target = $region44
      $region43: #{roberta_forward.3} parent=39 // pred_region
        %p214 = scmp.lt.s32.totalorder %s15, 1
        %s215 = scalar_select %p214, %s15, 1
        %s216 = smul.addr %s215, 8
        %s217 = scalar_lea.vmem %s3, %s216
      $region44: #{roberta_forward.3} parent=39 // pred_fallthru
        _
    $region40: #{roberta_forward.3} parent=5 // pred_fallthru
      _
  $region6: #{roberta_forward.3} parent=0 // loop_footer
    %s13 = sadd.s32 1, %s9
  $region7: #{roberta_forward.3} parent=0 // loop_footer_branch
    %8 = sbr.rel target = $region3
  $region8: #{roberta_forward.3} parent=0 // loop_exit
    _

// kernel: roberta_forward.4
$region0: #{roberta_forward.4}
  #allocation0 [shape = 'u32[]', space=smem, size = 0x4, offset = 0x4, fixed_abs, tag = 'smem constant byte address 0x4 - core index']
  #allocation1 [shape = 'u32[144,128]{1,0:T(1,128)}', space=vmem, size = 0x12000, scoped, tag = 'internal scratch']
  %s0 = inlined_call_operand.vmem [shape: f32[2,8,32], index: 0, kind: input, shape index: {}]
  %s1 = inlined_call_operand.vmem [shape: f32[2,1,8], index: 1, kind: input, shape index: {}]
  %s2 = inlined_call_operand.vmem [shape: bf16[32,96], index: 2, kind: input, shape index: {}]
  %s3 = inlined_call_operand.vmem [shape: f32[1,96], index: 3, kind: input, shape index: {}]
  %s4 = inlined_call_operand.vmem [shape: bf16[4,8,32], index: 4, kind: input, shape index: {}]
  %s5 = inlined_call_operand.vmem [shape: f32[1,32], index: 5, kind: input, shape index: {}]
  %s6 = inlined_call_operand.vmem [shape: f32[1,32], index: 6, kind: input, shape index: {}]
  %s7 = inlined_call_operand.vmem [shape: f32[1,32], index: 7, kind: input, shape index: {}]
  %s8 = inlined_call_operand.vmem [shape: bf16[32,64], index: 8, kind: input, shape index: {}]
  %s9 = inlined_call_operand.vmem [shape: f32[1,64], index: 9, kind: input, shape index: {}]
  %s10 = inlined_call_operand.vmem [shape: bf16[64,32], index: 10, kind: input, shape index: {}]
  %s11 = inlined_call_operand.vmem [shape: f32[1,32], index: 11, kind: input, shape index: {}]
  %s12 = inlined_call_operand.vmem [shape: f32[1,32], index: 12, kind: input, shape index: {}]
  %s13 = inlined_call_operand.vmem [shape: f32[1,32], index: 13, kind: input, shape index: {}]
  %s14 = inlined_call_operand.vmem [shape: f32[2,8,32], index: 14, kind: output, shape index: {}]
  %s15 = sld [smem:[#allocation0]]
  $region89: #{roberta_forward.4} parent=0
    _
  %s17 = ssub.s32 1, %s15
  %s18 = scalar_select 0, %s17, %s15
  loop: start=0, step=1, limit=4
  $region2: #{roberta_forward.4} parent=0 // loop_pre_header
    _
  $region3: #{roberta_forward.4} parent=0 // loop_header
    %s20 = sphi 0, %s24
    %p21 = scmp.ge.s32.totalorder %s20, 4
    %s30 = sphi 0, %s32
    %s33 = sphi 0, %s30
    %s34 = sphi 0, %s33
    %s50 = sphi 0, %s34
    %s56 = sphi 0, %s58
    %s59 = sphi 0, %s56
    %s60 = sphi 0, %s59
    %s76 = sphi 0, %s60
    %s80 = sphi 0, %s80
    %s82 = sphi 0, %s80
    %s83 = sphi 0, %s82
    %s97 = sphi 0, %s83
    %s101 = sphi 0, %s101
    %s103 = sphi 0, %s101
    %s104 = sphi 0, %s103
    %s118 = sphi 0, %s104
    %s122 = sphi 0, %s122
    %s124 = sphi 0, %s122
    %s125 = sphi 0, %s124
    %s139 = sphi 0, %s125
    %s143 = sphi 0, %s143
    %s145 = sphi 0, %s143
    %s146 = sphi 0, %s145
    %s160 = sphi 0, %s146
    %s164 = sphi 0, %s164
    %s166 = sphi 0, %s164
    %s167 = sphi 0, %s166
    %s181 = sphi 0, %s167
    %s185 = sphi 0, %s185
    %s187 = sphi 0, %s185
    %s188 = sphi 0, %s187
    %s202 = sphi 0, %s188
    %s206 = sphi 0, %s206
    %s208 = sphi 0, %s206
    %s209 = sphi 0, %s208
    %s223 = sphi 0, %s209
    %s227 = sphi 0, %s227
    %s229 = sphi 0, %s227
    %s230 = sphi 0, %s229
    %s244 = sphi 0, %s230
    %s248 = sphi 0, %s248
    %s250 = sphi 0, %s248
    %s251 = sphi 0, %s250
    %s265 = sphi 0, %s251
    %s269 = sphi 0, %s269
    %s271 = sphi 0, %s269
    %s272 = sphi 0, %s271
    %s286 = sphi 0, %s272
    %s290 = sphi 0, %s290
    %s292 = sphi 0, %s290
    %s293 = sphi 0, %s292
    %s307 = sphi 0, %s293
    %s311 = sphi 0, %s311
    %s313 = sphi 0, %s311
    %s314 = sphi 0, %s313
    %s328 = sphi 0, %s314
    %s334 = sphi 0, %s336
    %s337 = sphi 0, %s334
    %s338 = sphi 0, %s337
    %s354 = sphi 0, %s338
  $region4: #{roberta_forward.4} parent=0 // loop_header_branch
    %23 = sbr.rel (%p21) target = $region8
  $region5: #{roberta_forward.4} parent=0 // loop_body
    %s25 = ssub.s32 %s20, 1
    %s26 = ssub.s32 %s20, 2
    %s27 = sadd.s32 %s20, 1
    %s28 = ssub.s32 %s20, %s27
    %p29 = scmp.eq.s32.totalorder %s28, 0
    %s31 = sadd.s32 %s30, 1
    %s32 = scalar_select %p29, %s30, %s31
    %p35 = pneg %p29
    %p36 = scmp.eq.s32.totalorder %s20, 1
    %p37 = por %p35, %p36
    %p38 = scmp.ne.s32.totalorder %s30, %s33
    %p39 = scmp.eq.s32.totalorder %s20, 0
    %p40 = por %p38, %p39
    %p41 = scmp.ne.s32.totalorder %s30, %s33
    %p42 = scmp.eq.s32.totalorder %s25, 1
    %p43 = por %p41, %p42
    %p44 = scmp.ne.s32.totalorder %s33, %s34
    %p45 = scmp.eq.s32.totalorder %s25, 0
    %p46 = por %p44, %p45
    %p47 = scmp.ne.s32.totalorder %s33, %s34
    %p48 = scmp.eq.s32.totalorder %s26, 1
    %p49 = por %p47, %p48
    %p51 = scmp.ne.s32.totalorder %s34, %s50
    %p52 = scmp.eq.s32.totalorder %s26, 0
    %p53 = por %p51, %p52
    %s54 = ssub.s32 %s20, %s27
    %p55 = scmp.eq.s32.totalorder %s54, 0
    %s57 = sadd.s32 %s56, 1
    %s58 = scalar_select %p55, %s56, %s57
    %p61 = pneg %p55
    %p62 = scmp.eq.s32.totalorder %s20, 1
    %p63 = por %p61, %p62
    %p64 = scmp.ne.s32.totalorder %s56, %s59
    %p65 = scmp.eq.s32.totalorder %s20, 0
    %p66 = por %p64, %p65
    %p67 = scmp.ne.s32.totalorder %s56, %s59
    %p68 = scmp.eq.s32.totalorder %s25, 1
    %p69 = por %p67, %p68
    %p70 = scmp.ne.s32.totalorder %s59, %s60
    %p71 = scmp.eq.s32.totalorder %s25, 0
    %p72 = por %p70, %p71
    %p73 = scmp.ne.s32.totalorder %s59, %s60
    %p74 = scmp.eq.s32.totalorder %s26, 1
    %p75 = por %p73, %p74
    %p77 = scmp.ne.s32.totalorder %s60, %s76
    %p78 = scmp.eq.s32.totalorder %s26, 0
    %p79 = por %p77, %p78
    %s81 = sadd.s32 %s80, 1
    %p84 = scmp.eq.s32.totalorder %s20, 1
    %p85 = scmp.ne.s32.totalorder %s80, %s82
    %p86 = scmp.eq.s32.totalorder %s20, 0
    %p87 = por %p85, %p86
    %p88 = scmp.ne.s32.totalorder %s80, %s82
    %p89 = scmp.eq.s32.totalorder %s25, 1
    %p90 = por %p88, %p89
    %p91 = scmp.ne.s32.totalorder %s82, %s83
    %p92 = scmp.eq.s32.totalorder %s25, 0
    %p93 = por %p91, %p92
    %p94 = scmp.ne.s32.totalorder %s82, %s83
    %p95 = scmp.eq.s32.totalorder %s26, 1
    %p96 = por %p94, %p95
    %p98 = scmp.ne.s32.totalorder %s83, %s97
    %p99 = scmp.eq.s32.totalorder %s26, 0
    %p100 = por %p98, %p99
    %s102 = sadd.s32 %s101, 1
    %p105 = scmp.eq.s32.totalorder %s20, 1
    %p106 = scmp.ne.s32.totalorder %s101, %s103
    %p107 = scmp.eq.s32.totalorder %s20, 0
    %p108 = por %p106, %p107
    %p109 = scmp.ne.s32.totalorder %s101, %s103
    %p110 = scmp.eq.s32.totalorder %s25, 1
    %p111 = por %p109, %p110
    %p112 = scmp.ne.s32.totalorder %s103, %s104
    %p113 = scmp.eq.s32.totalorder %s25, 0
    %p114 = por %p112, %p113
    %p115 = scmp.ne.s32.totalorder %s103, %s104
    %p116 = scmp.eq.s32.totalorder %s26, 1
    %p117 = por %p115, %p116
    %p119 = scmp.ne.s32.totalorder %s104, %s118
    %p120 = scmp.eq.s32.totalorder %s26, 0
    %p121 = por %p119, %p120
    %s123 = sadd.s32 %s122, 1
    %p126 = scmp.eq.s32.totalorder %s20, 1
    %p127 = scmp.ne.s32.totalorder %s122, %s124
    %p128 = scmp.eq.s32.totalorder %s20, 0
    %p129 = por %p127, %p128
    %p130 = scmp.ne.s32.totalorder %s122, %s124
    %p131 = scmp.eq.s32.totalorder %s25, 1
    %p132 = por %p130, %p131
    %p133 = scmp.ne.s32.totalorder %s124, %s125
    %p134 = scmp.eq.s32.totalorder %s25, 0
    %p135 = por %p133, %p134
    %p136 = scmp.ne.s32.totalorder %s124, %s125
    %p137 = scmp.eq.s32.totalorder %s26, 1
    %p138 = por %p136, %p137
    %p140 = scmp.ne.s32.totalorder %s125, %s139
    %p141 = scmp.eq.s32.totalorder %s26, 0
    %p142 = por %p140, %p141
    %s144 = sadd.s32 %s143, 1
    %p147 = scmp.eq.s32.totalorder %s20, 1
    %p148 = scmp.ne.s32.totalorder %s143, %s145
    %p149 = scmp.eq.s32.totalorder %s20, 0
    %p150 = por %p148, %p149
    %p151 = scmp.ne.s32.totalorder %s143, %s145
    %p152 = scmp.eq.s32.totalorder %s25, 1
    %p153 = por %p151, %p152
    %p154 = scmp.ne.s32.totalorder %s145, %s146
    %p155 = scmp.eq.s32.totalorder %s25, 0
    %p156 = por %p154, %p155
    %p157 = scmp.ne.s32.totalorder %s145, %s146
    %p158 = scmp.eq.s32.totalorder %s26, 1
    %p159 = por %p157, %p158
    %p161 = scmp.ne.s32.totalorder %s146, %s160
    %p162 = scmp.eq.s32.totalorder %s26, 0
    %p163 = por %p161, %p162
    %s165 = sadd.s32 %s164, 1
    %p168 = scmp.eq.s32.totalorder %s20, 1
    %p169 = scmp.ne.s32.totalorder %s164, %s166
    %p170 = scmp.eq.s32.totalorder %s20, 0
    %p171 = por %p169, %p170
    %p172 = scmp.ne.s32.totalorder %s164, %s166
    %p173 = scmp.eq.s32.totalorder %s25, 1
    %p174 = por %p172, %p173
    %p175 = scmp.ne.s32.totalorder %s166, %s167
    %p176 = scmp.eq.s32.totalorder %s25, 0
    %p177 = por %p175, %p176
    %p178 = scmp.ne.s32.totalorder %s166, %s167
    %p179 = scmp.eq.s32.totalorder %s26, 1
    %p180 = por %p178, %p179
    %p182 = scmp.ne.s32.totalorder %s167, %s181
    %p183 = scmp.eq.s32.totalorder %s26, 0
    %p184 = por %p182, %p183
    %s186 = sadd.s32 %s185, 1
    %p189 = scmp.eq.s32.totalorder %s20, 1
    %p190 = scmp.ne.s32.totalorder %s185, %s187
    %p191 = scmp.eq.s32.totalorder %s20, 0
    %p192 = por %p190, %p191
    %p193 = scmp.ne.s32.totalorder %s185, %s187
    %p194 = scmp.eq.s32.totalorder %s25, 1
    %p195 = por %p193, %p194
    %p196 = scmp.ne.s32.totalorder %s187, %s188
    %p197 = scmp.eq.s32.totalorder %s25, 0
    %p198 = por %p196, %p197
    %p199 = scmp.ne.s32.totalorder %s187, %s188
    %p200 = scmp.eq.s32.totalorder %s26, 1
    %p201 = por %p199, %p200
    %p203 = scmp.ne.s32.totalorder %s188, %s202
    %p204 = scmp.eq.s32.totalorder %s26, 0
    %p205 = por %p203, %p204
    %s207 = sadd.s32 %s206, 1
    %p210 = scmp.eq.s32.totalorder %s20, 1
    %p211 = scmp.ne.s32.totalorder %s206, %s208
    %p212 = scmp.eq.s32.totalorder %s20, 0
    %p213 = por %p211, %p212
    %p214 = scmp.ne.s32.totalorder %s206, %s208
    %p215 = scmp.eq.s32.totalorder %s25, 1
    %p216 = por %p214, %p215
    %p217 = scmp.ne.s32.totalorder %s208, %s209
    %p218 = scmp.eq.s32.totalorder %s25, 0
    %p219 = por %p217, %p218
    %p220 = scmp.ne.s32.totalorder %s208, %s209
    %p221 = scmp.eq.s32.totalorder %s26, 1
    %p222 = por %p220, %p221
    %p224 = scmp.ne.s32.totalorder %s209, %s223
    %p225 = scmp.eq.s32.totalorder %s26, 0
    %p226 = por %p224, %p225
    %s228 = sadd.s32 %s227, 1
    %p231 = scmp.eq.s32.totalorder %s20, 1
    %p232 = scmp.ne.s32.totalorder %s227, %s229
    %p233 = scmp.eq.s32.totalorder %s20, 0
    %p234 = por %p232, %p233
    %p235 = scmp.ne.s32.totalorder %s227, %s229
    %p236 = scmp.eq.s32.totalorder %s25, 1
    %p237 = por %p235, %p236
    %p238 = scmp.ne.s32.totalorder %s229, %s230
    %p239 = scmp.eq.s32.totalorder %s25, 0
    %p240 = por %p238, %p239
    %p241 = scmp.ne.s32.totalorder %s229, %s230
    %p242 = scmp.eq.s32.totalorder %s26, 1
    %p243 = por %p241, %p242
    %p245 = scmp.ne.s32.totalorder %s230, %s244
    %p246 = scmp.eq.s32.totalorder %s26, 0
    %p247 = por %p245, %p246
    %s249 = sadd.s32 %s248, 1
    %p252 = scmp.eq.s32.totalorder %s20, 1
    %p253 = scmp.ne.s32.totalorder %s248, %s250
    %p254 = scmp.eq.s32.totalorder %s20, 0
    %p255 = por %p253, %p254
    %p256 = scmp.ne.s32.totalorder %s248, %s250
    %p257 = scmp.eq.s32.totalorder %s25, 1
    %p258 = por %p256, %p257
    %p259 = scmp.ne.s32.totalorder %s250, %s251
    %p260 = scmp.eq.s32.totalorder %s25, 0
    %p261 = por %p259, %p260
    %p262 = scmp.ne.s32.totalorder %s250, %s251
    %p263 = scmp.eq.s32.totalorder %s26, 1
    %p264 = por %p262, %p263
    %p266 = scmp.ne.s32.totalorder %s251, %s265
    %p267 = scmp.eq.s32.totalorder %s26, 0
    %p268 = por %p266, %p267
    %s270 = sadd.s32 %s269, 1
    %p273 = scmp.eq.s32.totalorder %s20, 1
    %p274 = scmp.ne.s32.totalorder %s269, %s271
    %p275 = scmp.eq.s32.totalorder %s20, 0
    %p276 = por %p274, %p275
    %p277 = scmp.ne.s32.totalorder %s269, %s271
    %p278 = scmp.eq.s32.totalorder %s25, 1
    %p279 = por %p277, %p278
    %p280 = scmp.ne.s32.totalorder %s271, %s272
    %p281 = scmp.eq.s32.totalorder %s25, 0
    %p282 = por %p280, %p281
    %p283 = scmp.ne.s32.totalorder %s271, %s272
    %p284 = scmp.eq.s32.totalorder %s26, 1
    %p285 = por %p283, %p284
    %p287 = scmp.ne.s32.totalorder %s272, %s286
    %p288 = scmp.eq.s32.totalorder %s26, 0
    %p289 = por %p287, %p288
    %s291 = sadd.s32 %s290, 1
    %p294 = scmp.eq.s32.totalorder %s20, 1
    %p295 = scmp.ne.s32.totalorder %s290, %s292
    %p296 = scmp.eq.s32.totalorder %s20, 0
    %p297 = por %p295, %p296
    %p298 = scmp.ne.s32.totalorder %s290, %s292
    %p299 = scmp.eq.s32.totalorder %s25, 1
    %p300 = por %p298, %p299
    %p301 = scmp.ne.s32.totalorder %s292, %s293
    %p302 = scmp.eq.s32.totalorder %s25, 0
    %p303 = por %p301, %p302
    %p304 = scmp.ne.s32.totalorder %s292, %s293
    %p305 = scmp.eq.s32.totalorder %s26, 1
    %p306 = por %p304, %p305
    %p308 = scmp.ne.s32.totalorder %s293, %s307
    %p309 = scmp.eq.s32.totalorder %s26, 0
    %p310 = por %p308, %p309
    %s312 = sadd.s32 %s311, 1
    %p315 = scmp.eq.s32.totalorder %s20, 1
    %p316 = scmp.ne.s32.totalorder %s311, %s313
    %p317 = scmp.eq.s32.totalorder %s20, 0
    %p318 = por %p316, %p317
    %p319 = scmp.ne.s32.totalorder %s311, %s313
    %p320 = scmp.eq.s32.totalorder %s25, 1
    %p321 = por %p319, %p320
    %p322 = scmp.ne.s32.totalorder %s313, %s314
    %p323 = scmp.eq.s32.totalorder %s25, 0
    %p324 = por %p322, %p323
    %p325 = scmp.ne.s32.totalorder %s313, %s314
    %p326 = scmp.eq.s32.totalorder %s26, 1
    %p327 = por %p325, %p326
    %p329 = scmp.ne.s32.totalorder %s314, %s328
    %p330 = scmp.eq.s32.totalorder %s26, 0
    %p331 = por %p329, %p330
    %s332 = ssub.s32 %s20, %s27
    %p333 = scmp.eq.s32.totalorder %s332, 0
    %s335 = sadd.s32 %s334, 1
    %s336 = scalar_select %p333, %s334, %s335
    %p339 = pneg %p333
    %p340 = scmp.eq.s32.totalorder %s20, 1
    %p341 = por %p339, %p340
    %p342 = scmp.ne.s32.totalorder %s334, %s337
    %p343 = scmp.eq.s32.totalorder %s20, 0
    %p344 = por %p342, %p343
    %p345 = scmp.ne.s32.totalorder %s334, %s337
    %p346 = scmp.eq.s32.totalorder %s25, 1
    %p347 = por %p345, %p346
    %p348 = scmp.ne.s32.totalorder %s337, %s338
    %p349 = scmp.eq.s32.totalorder %s25, 0
    %p350 = por %p348, %p349
    %p351 = scmp.ne.s32.totalorder %s337, %s338
    %p352 = scmp.eq.s32.totalorder %s26, 1
    %p353 = por %p351, %p352
    %p355 = scmp.ne.s32.totalorder %s338, %s354
    %p356 = scmp.eq.s32.totalorder %s26, 0
    %p357 = por %p355, %p356
    %p358 = scmp.le.s32.totalorder 1, %s20
    %p359 = scmp.lt.s32.totalorder %s20, 3
    %p360 = pnand %p358, %p359
    %p361 = pneg %p360
    // Predicated region
    $region9: #{roberta_forward.4} parent=5 // pred_check
      _
    $region10: #{roberta_forward.4} parent=5 // pred_check_branch
      %363 = sbr.rel (%p360) target = $region12
    $region11: #{roberta_forward.4} parent=5 // pred_region
      %s364 = ssub.s32 %s20, 1
      // Predicated region
      $region13: #{roberta_forward.4} parent=11 // pred_check
        %p365 = pneg %p93
      $region14: #{roberta_forward.4} parent=11 // pred_check_branch
        %367 = sbr.rel (%p365) target = $region16
      $region15: #{roberta_forward.4} parent=11 // pred_region
        _
      $region16: #{roberta_forward.4} parent=11 // pred_fallthru
        _
      // Predicated region
      $region17: #{roberta_forward.4} parent=11 // pred_check
        %p368 = pneg %p114
      $region18: #{roberta_forward.4} parent=11 // pred_check_branch
        %370 = sbr.rel (%p368) target = $region20
      $region19: #{roberta_forward.4} parent=11 // pred_region
        _
      $region20: #{roberta_forward.4} parent=11 // pred_fallthru
        _
      // Predicated region
      $region21: #{roberta_forward.4} parent=11 // pred_check
        %p371 = pneg %p135
      $region22: #{roberta_forward.4} parent=11 // pred_check_branch
        %373 = sbr.rel (%p371) target = $region24
      $region23: #{roberta_forward.4} parent=11 // pred_region
        _
      $region24: #{roberta_forward.4} parent=11 // pred_fallthru
        _
      // Predicated region
      $region25: #{roberta_forward.4} parent=11 // pred_check
        %p374 = pneg %p156
      $region26: #{roberta_forward.4} parent=11 // pred_check_branch
        %376 = sbr.rel (%p374) target = $region28
      $region27: #{roberta_forward.4} parent=11 // pred_region
        _
      $region28: #{roberta_forward.4} parent=11 // pred_fallthru
        _
      // Predicated region
      $region29: #{roberta_forward.4} parent=11 // pred_check
        %p377 = pneg %p177
      $region30: #{roberta_forward.4} parent=11 // pred_check_branch
        %379 = sbr.rel (%p377) target = $region32
      $region31: #{roberta_forward.4} parent=11 // pred_region
        _
      $region32: #{roberta_forward.4} parent=11 // pred_fallthru
        _
      // Predicated region
      $region33: #{roberta_forward.4} parent=11 // pred_check
        %p380 = pneg %p198
      $region34: #{roberta_forward.4} parent=11 // pred_check_branch
        %382 = sbr.rel (%p380) target = $region36
      $region35: #{roberta_forward.4} parent=11 // pred_region
        _
      $region36: #{roberta_forward.4} parent=11 // pred_fallthru
        _
      // Predicated region
      $region37: #{roberta_forward.4} parent=11 // pred_check
        %p383 = pneg %p219
      $region38: #{roberta_forward.4} parent=11 // pred_check_branch
        %385 = sbr.rel (%p383) target = $region40
      $region39: #{roberta_forward.4} parent=11 // pred_region
        _
      $region40: #{roberta_forward.4} parent=11 // pred_fallthru
        _
      // Predicated region
      $region41: #{roberta_forward.4} parent=11 // pred_check
        %p386 = pneg %p240
      $region42: #{roberta_forward.4} parent=11 // pred_check_branch
        %388 = sbr.rel (%p386) target = $region44
      $region43: #{roberta_forward.4} parent=11 // pred_region
        _
      $region44: #{roberta_forward.4} parent=11 // pred_fallthru
        _
      // Predicated region
      $region45: #{roberta_forward.4} parent=11 // pred_check
        %p389 = pneg %p261
      $region46: #{roberta_forward.4} parent=11 // pred_check_branch
        %391 = sbr.rel (%p389) target = $region48
      $region47: #{roberta_forward.4} parent=11 // pred_region
        _
      $region48: #{roberta_forward.4} parent=11 // pred_fallthru
        _
      // Predicated region
      $region49: #{roberta_forward.4} parent=11 // pred_check
        %p392 = pneg %p282
      $region50: #{roberta_forward.4} parent=11 // pred_check_branch
        %394 = sbr.rel (%p392) target = $region52
      $region51: #{roberta_forward.4} parent=11 // pred_region
        _
      $region52: #{roberta_forward.4} parent=11 // pred_fallthru
        _
      // Predicated region
      $region53: #{roberta_forward.4} parent=11 // pred_check
        %p395 = pneg %p303
      $region54: #{roberta_forward.4} parent=11 // pred_check_branch
        %397 = sbr.rel (%p395) target = $region56
      $region55: #{roberta_forward.4} parent=11 // pred_region
        _
      $region56: #{roberta_forward.4} parent=11 // pred_fallthru
        _
      // Predicated region
      $region57: #{roberta_forward.4} parent=11 // pred_check
        %p398 = pneg %p324
      $region58: #{roberta_forward.4} parent=11 // pred_check_branch
        %400 = sbr.rel (%p398) target = $region60
      $region59: #{roberta_forward.4} parent=11 // pred_region
        _
      $region60: #{roberta_forward.4} parent=11 // pred_fallthru
        _
    $region12: #{roberta_forward.4} parent=5 // pred_fallthru
      _
    %p401 = scmp.lt.s32.totalorder %s20, 2
    // Predicated region
    $region61: #{roberta_forward.4} parent=5 // pred_check
      %p402 = pneg %p401
    $region62: #{roberta_forward.4} parent=5 // pred_check_branch
      %404 = sbr.rel (%p402) target = $region64
    $region63: #{roberta_forward.4} parent=5 // pred_region
      // Predicated region
      $region65: #{roberta_forward.4} parent=63 // pred_check
        %p405 = pneg %p40
      $region66: #{roberta_forward.4} parent=63 // pred_check_branch
        %407 = sbr.rel (%p405) target = $region68
      $region67: #{roberta_forward.4} parent=63 // pred_region
        %p408 = scmp.lt.s32.totalorder %s20, 1
        %s409 = scalar_select %p408, %s20, 1
        %s410 = smul.addr %s409, 8
        %s411 = scalar_lea.vmem %s0, %s410
      $region68: #{roberta_forward.4} parent=63 // pred_fallthru
        _
      // Predicated region
      $region69: #{roberta_forward.4} parent=63 // pred_check
        %p412 = pneg %p66
      $region70: #{roberta_forward.4} parent=63 // pred_check_branch
        %414 = sbr.rel (%p412) target = $region72
      $region71: #{roberta_forward.4} parent=63 // pred_region
        %p415 = scmp.lt.s32.totalorder %s20, 1
        %s416 = scalar_select %p415, %s20, 1
        %s417 = scalar_lea.vmem %s1, %s416
      $region72: #{roberta_forward.4} parent=63 // pred_fallthru
        _
    $region64: #{roberta_forward.4} parent=5 // pred_fallthru
      _
    %p418 = scmp.le.s32.totalorder 1, %s20
    %p419 = scmp.lt.s32.totalorder %s20, 3
    %p420 = pnand %p418, %p419
    %p421 = pneg %p420
    // Predicated region
    $region73: #{roberta_forward.4} parent=5 // pred_check
      _
    $region74: #{roberta_forward.4} parent=5 // pred_check_branch
      %423 = sbr.rel (%p420) target = $region76
    $region75: #{roberta_forward.4} parent=5 // pred_region
      %s424 = ssub.s32 %s20, 1
      %p425 = scmp.lt.s32.totalorder %s25, 1
      %s426 = scalar_select %p425, %s25, 1
      %s427 = smul.addr %s426, 8
      %s428 = scalar_lea.vmem %s0, %s427
      %p429 = pneg %p46
      %p430 = pneg %p43
      %p431 = scmp.lt.s32.totalorder %s25, 1
      %s432 = scalar_select %p431, %s25, 1
      %s433 = scalar_lea.vmem %s1, %s432
      %p434 = pneg %p72
      %p435 = pneg %p69
      %p436 = pneg %p93
      %p437 = pneg %p90
      %p438 = pneg %p114
      %p439 = pneg %p111
      %p440 = pneg %p135
      %p441 = pneg %p132
      %p442 = pneg %p156
      %p443 = pneg %p153
      %p444 = pneg %p177
      %p445 = pneg %p174
      %p446 = pneg %p198
      %p447 = pneg %p195
      %p448 = pneg %p219
      %p449 = pneg %p216
      %p450 = pneg %p240
      %p451 = pneg %p237
      %p452 = pneg %p261
      %p453 = pneg %p258
      %p454 = pneg %p282
      %p455 = pneg %p279
      %p456 = pneg %p303
      %p457 = pneg %p300
      %p458 = pneg %p324
      %p459 = pneg %p321
      %p460 = pneg %p350
      %p461 = pneg %p347
      %p462 = scmp.lt.s32.totalorder %s25, 1
      %s463 = scalar_select %p462, %s25, 1
      %s464 = smul.addr %s463, 8
      %s465 = scalar_lea.vmem %s14, %s464
      %p466 = scmp.lt.s32.totalorder %s25, 1
      %s467 = scalar_select %p466, %s25, 1
      %s468 = smul.addr %s467, 8
      %s469 = scalar_lea.vmem %s0, %s468
      %p470 = scmp.lt.s32.totalorder %s25, 1
      %s471 = scalar_select %p470, %s25, 1
      %s472 = scalar_lea.vmem %s1, %s471
      %p473 = scmp.lt.s32.totalorder %s25, 1
      %s474 = scalar_select %p473, %s25, 1
      %s475 = smul.addr %s474, 8
      %s476 = scalar_lea.vmem %s14, %s475
      %v478 = vld [vmem:[%s469] sm:$0xff]
      %v479 = vld [vmem:[%s472] sm:$0x1]
      %v480 = vsub.f32 1.0, %v479
      %v481 = vmul.f32 %v480, -1e+09
      %v482 = vpack.c.bf16 %v478, %v478
      %v483 = vld [vmem:[%s2] sm:$0xf]
      %v484 = vld [vmem:[%s2 + $0x4] sm:$0xf]
      %v485 = vld [vmem:[%s2 + $0x8] sm:$0xf]
      %v486 = vld [vmem:[%s2 + $0xc] sm:$0xf]
      %v487 = vld [vmem:[%s3] sm:$0x1]
      %v489 = vlaneseq
      %v490 = vshrl.u32 %v489, 7
      %v491 = vsub.s32 0, %v490
      %v492 = vrot.slane %v487, %v491
      %v498 = vunpack.c.l.b16 %v483
      %v499 = vunpack.c.l.b16 %v484
      %v500 = vunpack.c.l.b16 %v485
      %v501 = vunpack.c.l.b16 %v486
      %v502 = vpack.c.b16 %v499, %v498
      %v503 = vpack.c.b16 %v501, %v500
      %vm506 = vcmask 261120
      %v508 = vsel %vm506, %v482, 0
      %510 = vmatprep.subr.bf16.mxu0 0
      %511 = vmatpush1.bf16.msra.mxu0 %v502
      %512 = vmatprep.subr.bf16.mxu0 0
      %513 = vmatpush1.bf16.msra.mxu0 %v503
      %514 = vmatprep.subr.bf16.mxu0 0
      %515 = vmatpush1.bf16.msra.mxu0 0
      %516 = vmatprep.subr.bf16.mxu0 0
      %517 = vmatpush1.bf16.msra.mxu0 0
      %518 = vmatprep.subr.bf16.mxu0 0
      %519 = vmatpush1.bf16.msra.mxu0 0
      %520 = vmatprep.subr.bf16.mxu0 0
      %521 = vmatpush1.bf16.msra.mxu0 0
      %522 = vmatprep.subr.bf16.mxu0 0
      %523 = vmatpush1.bf16.msra.mxu0 0
      %524 = vmatprep.subr.bf16.mxu0 0
      %525 = vmatpush1.bf16.msra.mxu0 0
      %526 = vmatprep.subr.bf16.mxu0 0
      %527 = vmatpush1.bf16.msra.mxu0 0
      %528 = vmatprep.subr.bf16.mxu0 0
      %529 = vmatpush1.bf16.msra.mxu0 0
      %530 = vmatprep.subr.bf16.mxu0 0
      %531 = vmatpush1.bf16.msra.mxu0 0
      %532 = vmatprep.subr.bf16.mxu0 0
      %533 = vmatpush1.bf16.msra.mxu0 0
      %534 = vmatprep.subr.bf16.mxu0 0
      %535 = vmatpush1.bf16.msra.mxu0 0
      %536 = vmatprep.subr.bf16.mxu0 0
      %537 = vmatpush1.bf16.msra.mxu0 0
      %538 = vmatprep.subr.bf16.mxu0 0
      %539 = vmatpush1.bf16.msra.mxu0 0
      %540 = vmatprep.subr.bf16.mxu0 0
      %541 = vmatpush1.bf16.msra.mxu0 0
      %542 = vmatprep.mubr.bf16.mxu0 0
      %543 = vmatmul.mubr.bf16.gmra.mrb[0].mxu0 %v508
      %v544 = vpop.f32.mrb[0].mxu0
      %v545 = vadd.f32 %v492, %v544
      %v546 = vpop.f32.mrb[0].mxu0
      %v547 = vpop.f32.mrb[0].mxu0
      %v548 = vpop.f32.mrb[0].mxu0
      %549 = vdwg.mxu0
      %v550 = vld [vmem:[%s5] sm:$0x1]
      %v551 = vpack.c.bf16 %v545, %v545
      %553 = vrot.lane.b32.xlu0 %v551, 96
      %v554 = vpop.permute.xlu0 %553
      %vm555 = vcmask 64512
      %v557 = vsel %vm555, %v551, 0
      %v560 = vsel %vm555, %v554, 0
      %562 = vmatprep.subr.bf16.mxu0 0
      %563 = vmatpush1.bf16.xpose.msra.mxu0 %v560
      %564 = vmatprep.subr.bf16.mxu0 0
      %565 = vmatpush1.bf16.xpose.msra.mxu0 0
      %566 = vmatprep.subr.bf16.mxu0 0
      %567 = vmatpush1.bf16.xpose.msra.mxu0 0
      %568 = vmatprep.subr.bf16.mxu0 0
      %569 = vmatpush1.bf16.xpose.msra.mxu0 0
      %570 = vmatprep.subr.bf16.mxu0 0
      %571 = vmatpush1.bf16.xpose.msra.mxu0 0
      %572 = vmatprep.subr.bf16.mxu0 0
      %573 = vmatpush1.bf16.xpose.msra.mxu0 0
      %574 = vmatprep.subr.bf16.mxu0 0
      %575 = vmatpush1.bf16.xpose.msra.mxu0 0
      %576 = vmatprep.subr.bf16.mxu0 0
      %577 = vmatpush1.bf16.xpose.msra.mxu0 0
      %578 = vmatprep.subr.bf16.mxu0 0
      %579 = vmatpush1.bf16.xpose.msra.mxu0 0
      %580 = vmatprep.subr.bf16.mxu0 0
      %581 = vmatpush1.bf16.xpose.msra.mxu0 0
      %582 = vmatprep.subr.bf16.mxu0 0
      %583 = vmatpush1.bf16.xpose.msra.mxu0 0
      %584 = vmatprep.subr.bf16.mxu0 0
      %585 = vmatpush1.bf16.xpose.msra.mxu0 0
      %586 = vmatprep.subr.bf16.mxu0 0
      %587 = vmatpush1.bf16.xpose.msra.mxu0 0
      %588 = vmatprep.subr.bf16.mxu0 0
      %589 = vmatpush1.bf16.xpose.msra.mxu0 0
      %590 = vmatprep.subr.bf16.mxu0 0
      %591 = vmatpush1.bf16.xpose.msra.mxu0 0
      %592 = vmatprep.subr.bf16.mxu0 0
      %593 = vmatpush1.bf16.xpose.msra.mxu0 0
      %594 = vmatprep.mubr.bf16.mxu0 0
      %595 = vmatmul.mubr.bf16.gmra.mrb[0].mxu0 %v557
      %v596 = vpop.f32.mrb[0].mxu0
      %v597 = vadd.f32 0.0, %v596
      %v598 = vpop.f32.mrb[0].mxu0
      %v599 = vpop.f32.mrb[0].mxu0
      %v600 = vpop.f32.mrb[0].mxu0
      %601 = vdwg.mxu0
      %v602 = vmul.f32 %v597, 0.35355338
      %v604 = vlaneseq
      %v605 = vshrl.u32 %v604, 7
      %v606 = vsub.s32 0, %v605
      %v607 = vrot.slane %v481, %v606
      %v609 = vadd.f32 %v602, %v607
      %v610 = vsel %vm555, %v609, -inf
      %611 = vmax.xlane.f32.xlu0 %v610
      %v612 = vpop.xlane.xlu0 %611
      %v613 = vsub.f32 %v609, %v612
      %v614 = vmul.f32 %v613, 1.442695
      %v615 = vpow.pop %v614
      %v616 = vsel %vm555, %v615, 0.0
      %617 = vadd.xlane.f32.xlu0 %v616
      %v618 = vpop.xlane.xlu0 %617
      %v619 = vrcp.pop %v618
      %v620 = vmul.f32 %v615, %v619
      %v621 = vpack.c.bf16 %v620, %v620
      %622 = vrot.lane.b32.xlu0 %v551, 64
      %v623 = vpop.permute.xlu0 %622
      %v625 = vsel %vm555, %v621, 0
      %vm627 = vcmask 1043456
      %v629 = vsel %vm627, %v623, 0
      %631 = vmatprep.subr.bf16.mxu0 0
      %632 = vmatpush1.bf16.msra.mxu0 %v629
      %633 = vmatprep.subr.bf16.mxu0 0
      %634 = vmatpush1.bf16.msra.mxu0 0
      %635 = vmatprep.subr.bf16.mxu0 0
      %636 = vmatpush1.bf16.msra.mxu0 0
      %637 = vmatprep.subr.bf16.mxu0 0
      %638 = vmatpush1.bf16.msra.mxu0 0
      %639 = vmatprep.subr.bf16.mxu0 0
      %640 = vmatpush1.bf16.msra.mxu0 0
      %641 = vmatprep.subr.bf16.mxu0 0
      %642 = vmatpush1.bf16.msra.mxu0 0
      %643 = vmatprep.subr.bf16.mxu0 0
      %644 = vmatpush1.bf16.msra.mxu0 0
      %645 = vmatprep.subr.bf16.mxu0 0
      %646 = vmatpush1.bf16.msra.mxu0 0
      %647 = vmatprep.subr.bf16.mxu0 0
      %648 = vmatpush1.bf16.msra.mxu0 0
      %649 = vmatprep.subr.bf16.mxu0 0
      %650 = vmatpush1.bf16.msra.mxu0 0
      %651 = vmatprep.subr.bf16.mxu0 0
      %652 = vmatpush1.bf16.msra.mxu0 0
      %653 = vmatprep.subr.bf16.mxu0 0
      %654 = vmatpush1.bf16.msra.mxu0 0
      %655 = vmatprep.subr.bf16.mxu0 0
      %656 = vmatpush1.bf16.msra.mxu0 0
      %657 = vmatprep.subr.bf16.mxu0 0
      %658 = vmatpush1.bf16.msra.mxu0 0
      %659 = vmatprep.subr.bf16.mxu0 0
      %660 = vmatpush1.bf16.msra.mxu0 0
      %661 = vmatprep.subr.bf16.mxu0 0
      %662 = vmatpush1.bf16.msra.mxu0 0
      %663 = vmatprep.mubr.bf16.mxu0 0
      %664 = vmatmul.mubr.bf16.gmra.mrb[0].mxu0 %v625
      %v665 = vpop.f32.mrb[0].mxu0
      %v666 = vadd.f32 0.0, %v665
      %v667 = vpop.f32.mrb[0].mxu0
      %v668 = vpop.f32.mrb[0].mxu0
      %v669 = vpop.f32.mrb[0].mxu0
      %670 = vdwg.mxu0
      %v671 = vpack.c.bf16 %v666, %v666
      %v672 = vld [vmem:[%s4] sm:$0xf]
      %v674 = vsel %vm555, %v671, 0
      %v677 = vsel %vm627, %v672, 0
      %679 = vmatprep.subr.bf16.mxu0 0
      %680 = vmatpush1.bf16.msra.mxu0 %v677
      %681 = vmatprep.subr.bf16.mxu0 0
      %682 = vmatpush1.bf16.msra.mxu0 0
      %683 = vmatprep.subr.bf16.mxu0 0
      %684 = vmatpush1.bf16.msra.mxu0 0
      %685 = vmatprep.subr.bf16.mxu0 0
      %686 = vmatpush1.bf16.msra.mxu0 0
      %687 = vmatprep.subr.bf16.mxu0 0
      %688 = vmatpush1.bf16.msra.mxu0 0
      %689 = vmatprep.subr.bf16.mxu0 0
      %690 = vmatpush1.bf16.msra.mxu0 0
      %691 = vmatprep.subr.bf16.mxu0 0
      %692 = vmatpush1.bf16.msra.mxu0 0
      %693 = vmatprep.subr.bf16.mxu0 0
      %694 = vmatpush1.bf16.msra.mxu0 0
      %695 = vmatprep.subr.bf16.mxu0 0
      %696 = vmatpush1.bf16.msra.mxu0 0
      %697 = vmatprep.subr.bf16.mxu0 0
      %698 = vmatpush1.bf16.msra.mxu0 0
      %699 = vmatprep.subr.bf16.mxu0 0
      %700 = vmatpush1.bf16.msra.mxu0 0
      %701 = vmatprep.subr.bf16.mxu0 0
      %702 = vmatpush1.bf16.msra.mxu0 0
      %703 = vmatprep.subr.bf16.mxu0 0
      %704 = vmatpush1.bf16.msra.mxu0 0
      %705 = vmatprep.subr.bf16.mxu0 0
      %706 = vmatpush1.bf16.msra.mxu0 0
      %707 = vmatprep.subr.bf16.mxu0 0
      %708 = vmatpush1.bf16.msra.mxu0 0
      %709 = vmatprep.subr.bf16.mxu0 0
      %710 = vmatpush1.bf16.msra.mxu0 0
      %711 = vmatprep.mubr.bf16.mxu0 0
      %712 = vmatmul.mubr.bf16.gmra.mrb[0].mxu0 %v674
      %v713 = vpop.f32.mrb[0].mxu0
      %v714 = vadd.f32 0.0, %v713
      %v715 = vpop.f32.mrb[0].mxu0
      %v716 = vpop.f32.mrb[0].mxu0
      %v717 = vpop.f32.mrb[0].mxu0
      %718 = vdwg.mxu0
      %v720 = vlaneseq
      %v721 = vshrl.u32 %v720, 7
      %v722 = vsub.s32 0, %v721
      %v723 = vrot.slane %v550, %v722
      %v725 = vadd.f32 %v723, %v714
      %726 = vrot.lane.b32.xlu0 %v551, 120
      %v727 = vpop.permute.xlu0 %726
      %728 = vrot.lane.b32.xlu0 %v551, 88
      %v729 = vpop.permute.xlu0 %728
      %v731 = vsel %vm555, %v727, 0
      %v734 = vsel %vm555, %v729, 0
      %736 = vmatprep.subr.bf16.mxu0 0
      %737 = vmatpush1.bf16.xpose.msra.mxu0 %v734
      %738 = vmatprep.subr.bf16.mxu0 0
      %739 = vmatpush1.bf16.xpose.msra.mxu0 0
      %740 = vmatprep.subr.bf16.mxu0 0
      %741 = vmatpush1.bf16.xpose.msra.mxu0 0
      %742 = vmatprep.subr.bf16.mxu0 0
      %743 = vmatpush1.bf16.xpose.msra.mxu0 0
      %744 = vmatprep.subr.bf16.mxu0 0
      %745 = vmatpush1.bf16.xpose.msra.mxu0 0
      %746 = vmatprep.subr.bf16.mxu0 0
      %747 = vmatpush1.bf16.xpose.msra.mxu0 0
      %748 = vmatprep.subr.bf16.mxu0 0
      %749 = vmatpush1.bf16.xpose.msra.mxu0 0
      %750 = vmatprep.subr.bf16.mxu0 0
      %751 = vmatpush1.bf16.xpose.msra.mxu0 0
      %752 = vmatprep.subr.bf16.mxu0 0
      %753 = vmatpush1.bf16.xpose.msra.mxu0 0
      %754 = vmatprep.subr.bf16.mxu0 0
      %755 = vmatpush1.bf16.xpose.msra.mxu0 0
      %756 = vmatprep.subr.bf16.mxu0 0
      %757 = vmatpush1.bf16.xpose.msra.mxu0 0
      %758 = vmatprep.subr.bf16.mxu0 0
      %759 = vmatpush1.bf16.xpose.msra.mxu0 0
      %760 = vmatprep.subr.bf16.mxu0 0
      %761 = vmatpush1.bf16.xpose.msra.mxu0 0
      %762 = vmatprep.subr.bf16.mxu0 0
      %763 = vmatpush1.bf16.xpose.msra.mxu0 0
      %764 = vmatprep.subr.bf16.mxu0 0
      %765 = vmatpush1.bf16.xpose.msra.mxu0 0
      %766 = vmatprep.subr.bf16.mxu0 0
      %767 = vmatpush1.bf16.xpose.msra.mxu0 0
      %768 = vmatprep.mubr.bf16.mxu0 0
      %769 = vmatmul.mubr.bf16.gmra.mrb[0].mxu0 %v731
      %v770 = vpop.f32.mrb[0].mxu0
      %v771 = vadd.f32 0.0, %v770
      %v772 = vpop.f32.mrb[0].mxu0
      %v773 = vpop.f32.mrb[0].mxu0
      %v774 = vpop.f32.mrb[0].mxu0
      %775 = vdwg.mxu0
      %v776 = vmul.f32 %v771, 0.35355338
      %v777 = vadd.f32 %v776, %v607
      %v778 = vsel %vm555, %v777, -inf
      %779 = vmax.xlane.f32.xlu0 %v778
      %v780 = vpop.xlane.xlu0 %779
      %v781 = vsub.f32 %v777, %v780
      %v782 = vmul.f32 %v781, 1.442695
      %v783 = vpow.pop %v782
      %v784 = vsel %vm555, %v783, 0.0
      %785 = vadd.xlane.f32.xlu0 %v784
      %v786 = vpop.xlane.xlu0 %785
      %v787 = vrcp.pop %v786
      %v788 = vmul.f32 %v783, %v787
      %v789 = vpack.c.bf16 %v788, %v788
      %790 = vrot.lane.b32.xlu0 %v551, 56
      %v791 = vpop.permute.xlu0 %790
      %v793 = vsel %vm555, %v789, 0
      %v796 = vsel %vm627, %v791, 0
      %798 = vmatprep.subr.bf16.mxu0 0
      %799 = vmatpush1.bf16.msra.mxu0 %v796
      %800 = vmatprep.subr.bf16.mxu0 0
      %801 = vmatpush1.bf16.msra.mxu0 0
      %802 = vmatprep.subr.bf16.mxu0 0
      %803 = vmatpush1.bf16.msra.mxu0 0
      %804 = vmatprep.subr.bf16.mxu0 0
      %805 = vmatpush1.bf16.msra.mxu0 0
      %806 = vmatprep.subr.bf16.mxu0 0
      %807 = vmatpush1.bf16.msra.mxu0 0
      %808 = vmatprep.subr.bf16.mxu0 0
      %809 = vmatpush1.bf16.msra.mxu0 0
      %810 = vmatprep.subr.bf16.mxu0 0
      %811 = vmatpush1.bf16.msra.mxu0 0
      %812 = vmatprep.subr.bf16.mxu0 0
      %813 = vmatpush1.bf16.msra.mxu0 0
      %814 = vmatprep.subr.bf16.mxu0 0
      %815 = vmatpush1.bf16.msra.mxu0 0
      %816 = vmatprep.subr.bf16.mxu0 0
      %817 = vmatpush1.bf16.msra.mxu0 0
      %818 = vmatprep.subr.bf16.mxu0 0
      %819 = vmatpush1.bf16.msra.mxu0 0
      %820 = vmatprep.subr.bf16.mxu0 0
      %821 = vmatpush1.bf16.msra.mxu0 0
      %822 = vmatprep.subr.bf16.mxu0 0
      %823 = vmatpush1.bf16.msra.mxu0 0
      %824 = vmatprep.subr.bf16.mxu0 0
      %825 = vmatpush1.bf16.msra.mxu0 0
      %826 = vmatprep.subr.bf16.mxu0 0
      %827 = vmatpush1.bf16.msra.mxu0 0
      %828 = vmatprep.subr.bf16.mxu0 0
      %829 = vmatpush1.bf16.msra.mxu0 0
      %830 = vmatprep.mubr.bf16.mxu0 0
      %831 = vmatmul.mubr.bf16.gmra.mrb[0].mxu0 %v793
      %v832 = vpop.f32.mrb[0].mxu0
      %v833 = vadd.f32 0.0, %v832
      %v834 = vpop.f32.mrb[0].mxu0
      %v835 = vpop.f32.mrb[0].mxu0
      %v836 = vpop.f32.mrb[0].mxu0
      %837 = vdwg.mxu0
      %v838 = vpack.c.bf16 %v833, %v833
      %s839 = scalar_lea.vmem %s4, 4
      %v840 = vld [vmem:[%s839] sm:$0xf]
      %v842 = vsel %vm555, %v838, 0
      %v845 = vsel %vm627, %v840, 0
      %847 = vmatprep.subr.bf16.mxu0 0
      %848 = vmatpush1.bf16.msra.mxu0 %v845
      %849 = vmatprep.subr.bf16.mxu0 0
      %850 = vmatpush1.bf16.msra.mxu0 0
      %851 = vmatprep.subr.bf16.mxu0 0
      %852 = vmatpush1.bf16.msra.mxu0 0
      %853 = vmatprep.subr.bf16.mxu0 0
      %854 = vmatpush1.bf16.msra.mxu0 0
      %855 = vmatprep.subr.bf16.mxu0 0
      %856 = vmatpush1.bf16.msra.mxu0 0
      %857 = vmatprep.subr.bf16.mxu0 0
      %858 = vmatpush1.bf16.msra.mxu0 0
      %859 = vmatprep.subr.bf16.mxu0 0
      %860 = vmatpush1.bf16.msra.mxu0 0
      %861 = vmatprep.subr.bf16.mxu0 0
      %862 = vmatpush1.bf16.msra.mxu0 0
      %863 = vmatprep.subr.bf16.mxu0 0
      %864 = vmatpush1.bf16.msra.mxu0 0
      %865 = vmatprep.subr.bf16.mxu0 0
      %866 = vmatpush1.bf16.msra.mxu0 0
      %867 = vmatprep.subr.bf16.mxu0 0
      %868 = vmatpush1.bf16.msra.mxu0 0
      %869 = vmatprep.subr.bf16.mxu0 0
      %870 = vmatpush1.bf16.msra.mxu0 0
      %871 = vmatprep.subr.bf16.mxu0 0
      %872 = vmatpush1.bf16.msra.mxu0 0
      %873 = vmatprep.subr.bf16.mxu0 0
      %874 = vmatpush1.bf16.msra.mxu0 0
      %875 = vmatprep.subr.bf16.mxu0 0
      %876 = vmatpush1.bf16.msra.mxu0 0
      %877 = vmatprep.subr.bf16.mxu0 0
      %878 = vmatpush1.bf16.msra.mxu0 0
      %879 = vmatprep.mubr.bf16.mxu0 0
      %880 = vmatmul.mubr.bf16.gmra.mrb[0].mxu0 %v842
      %v881 = vpop.f32.mrb[0].mxu0
      %v882 = vadd.f32 0.0, %v881
      %v883 = vpop.f32.mrb[0].mxu0
      %v884 = vpop.f32.mrb[0].mxu0
      %v885 = vpop.f32.mrb[0].mxu0
      %886 = vdwg.mxu0
      %v887 = vadd.f32 %v725, %v882
      %888 = vrot.lane.b32.xlu0 %v551, 112
      %v889 = vpop.permute.xlu0 %888
      %890 = vrot.lane.b32.xlu0 %v551, 80
      %v891 = vpop.permute.xlu0 %890
      %v893 = vsel %vm555, %v889, 0
      %v896 = vsel %vm555, %v891, 0
      %898 = vmatprep.subr.bf16.mxu0 0
      %899 = vmatpush1.bf16.xpose.msra.mxu0 %v896
      %900 = vmatprep.subr.bf16.mxu0 0
      %901 = vmatpush1.bf16.xpose.msra.mxu0 0
      %902 = vmatprep.subr.bf16.mxu0 0
      %903 = vmatpush1.bf16.xpose.msra.mxu0 0
      %904 = vmatprep.subr.bf16.mxu0 0
      %905 = vmatpush1.bf16.xpose.msra.mxu0 0
      %906 = vmatprep.subr.bf16.mxu0 0
      %907 = vmatpush1.bf16.xpose.msra.mxu0 0
      %908 = vmatprep.subr.bf16.mxu0 0
      %909 = vmatpush1.bf16.xpose.msra.mxu0 0
      %910 = vmatprep.subr.bf16.mxu0 0
      %911 = vmatpush1.bf16.xpose.msra.mxu0 0
      %912 = vmatprep.subr.bf16.mxu0 0
      %913 = vmatpush1.bf16.xpose.msra.mxu0 0
      %914 = vmatprep.subr.bf16.mxu0 0
      %915 = vmatpush1.bf16.xpose.msra.mxu0 0
      %916 = vmatprep.subr.bf16.mxu0 0
      %917 = vmatpush1.bf16.xpose.msra.mxu0 0
      %918 = vmatprep.subr.bf16.mxu0 0
      %919 = vmatpush1.bf16.xpose.msra.mxu0 0
      %920 = vmatprep.subr.bf16.mxu0 0
      %921 = vmatpush1.bf16.xpose.msra.mxu0 0
      %922 = vmatprep.subr.bf16.mxu0 0
      %923 = vmatpush1.bf16.xpose.msra.mxu0 0
      %924 = vmatprep.subr.bf16.mxu0 0
      %925 = vmatpush1.bf16.xpose.msra.mxu0 0
      %926 = vmatprep.subr.bf16.mxu0 0
      %927 = vmatpush1.bf16.xpose.msra.mxu0 0
      %928 = vmatprep.subr.bf16.mxu0 0
      %929 = vmatpush1.bf16.xpose.msra.mxu0 0
      %930 = vmatprep.mubr.bf16.mxu0 0
      %931 = vmatmul.mubr.bf16.gmra.mrb[0].mxu0 %v893
      %v932 = vpop.f32.mrb[0].mxu0
      %v933 = vadd.f32 0.0, %v932
      %v934 = vpop.f32.mrb[0].mxu0
      %v935 = vpop.f32.mrb[0].mxu0
      %v936 = vpop.f32.mrb[0].mxu0
      %937 = vdwg.mxu0
      %v938 = vmul.f32 %v933, 0.35355338
      %v939 = vadd.f32 %v938, %v607
      %v940 = vsel %vm555, %v939, -inf
      %941 = vmax.xlane.f32.xlu0 %v940
      %v942 = vpop.xlane.xlu0 %941
      %v943 = vsub.f32 %v939, %v942
      %v944 = vmul.f32 %v943, 1.442695
      %v945 = vpow.pop %v944
      %v946 = vsel %vm555, %v945, 0.0
      %947 = vadd.xlane.f32.xlu0 %v946
      %v948 = vpop.xlane.xlu0 %947
      %v949 = vrcp.pop %v948
      %v950 = vmul.f32 %v945, %v949
      %v951 = vpack.c.bf16 %v950, %v950
      %952 = vrot.lane.b32.xlu0 %v551, 48
      %v953 = vpop.permute.xlu0 %952
      %v955 = vsel %vm555, %v951, 0
      %v958 = vsel %vm627, %v953, 0
      %960 = vmatprep.subr.bf16.mxu0 0
      %961 = vmatpush1.bf16.msra.mxu0 %v958
      %962 = vmatprep.subr.bf16.mxu0 0
      %963 = vmatpush1.bf16.msra.mxu0 0
      %964 = vmatprep.subr.bf16.mxu0 0
      %965 = vmatpush1.bf16.msra.mxu0 0
      %966 = vmatprep.subr.bf16.mxu0 0
      %967 = vmatpush1.bf16.msra.mxu0 0
      %968 = vmatprep.subr.bf16.mxu0 0
      %969 = vmatpush1.bf16.msra.mxu0 0
      %970 = vmatprep.subr.bf16.mxu0 0
      %971 = vmatpush1.bf16.msra.mxu0 0
      %972 = vmatprep.subr.bf16.mxu0 0
      %973 = vmatpush1.bf16.msra.mxu0 0
      %974 = vmatprep.subr.bf16.mxu0 0
      %975 = vmatpush1.bf16.msra.mxu0 0
      %976 = vmatprep.subr.bf16.mxu0 0
      %977 = vmatpush1.bf16.msra.mxu0 0
      %978 = vmatprep.subr.bf16.mxu0 0
      %979 = vmatpush1.bf16.msra.mxu0 0
      %980 = vmatprep.subr.bf16.mxu0 0
      %981 = vmatpush1.bf16.msra.mxu0 0
      %982 = vmatprep.subr.bf16.mxu0 0
      %983 = vmatpush1.bf16.msra.mxu0 0
      %984 = vmatprep.subr.bf16.mxu0 0
      %985 = vmatpush1.bf16.msra.mxu0 0
      %986 = vmatprep.subr.bf16.mxu0 0
      %987 = vmatpush1.bf16.msra.mxu0 0
      %988 = vmatprep.subr.bf16.mxu0 0
      %989 = vmatpush1.bf16.msra.mxu0 0
      %990 = vmatprep.subr.bf16.mxu0 0
      %991 = vmatpush1.bf16.msra.mxu0 0
      %992 = vmatprep.mubr.bf16.mxu0 0
      %993 = vmatmul.mubr.bf16.gmra.mrb[0].mxu0 %v955
      %v994 = vpop.f32.mrb[0].mxu0
      %v995 = vadd.f32 0.0, %v994
      %v996 = vpop.f32.mrb[0].mxu0
      %v997 = vpop.f32.mrb[0].mxu0
      %v998 = vpop.f32.mrb[0].mxu0
      %999 = vdwg.mxu0
      %v1000 = vpack.c.bf16 %v995, %v995
      %s1001 = scalar_lea.vmem %s4, 8
      %v1002 = vld [vmem:[%s1001] sm:$0xf]
      %v1004 = vsel %vm555, %v1000, 0
      %v1007 = vsel %vm627, %v1002, 0
      %1009 = vmatprep.subr.bf16.mxu0 0
      %1010 = vmatpush1.bf16.msra.mxu0 %v1007
      %1011 = vmatprep.subr.bf16.mxu0 0
      %1012 = vmatpush1.bf16.msra.mxu0 0
      %1013 = vmatprep.subr.bf16.mxu0 0
      %1014 = vmatpush1.bf16.msra.mxu0 0
      %1015 = vmatprep.subr.bf16.mxu0 0
      %1016 = vmatpush1.bf16.msra.mxu0 0
      %1017 = vmatprep.subr.bf16.mxu0 0
      %1018 = vmatpush1.bf16.msra.mxu0 0
      %1019 = vmatprep.subr.bf16.mxu0 0
      %1020 = vmatpush1.bf16.msra.mxu0 0
      %1021 = vmatprep.subr.bf16.mxu0 0
      %1022 = vmatpush1.bf16.msra.mxu0 0
      %1023 = vmatprep.subr.bf16.mxu0 0
      %1024 = vmatpush1.bf16.msra.mxu0 0
      %1025 = vmatprep.subr.bf16.mxu0 0
      %1026 = vmatpush1.bf16.msra.mxu0 0
      %1027 = vmatprep.subr.bf16.mxu0 0
      %1028 = vmatpush1.bf16.msra.mxu0 0
      %1029 = vmatprep.subr.bf16.mxu0 0
      %1030 = vmatpush1.bf16.msra.mxu0 0
      %1031 = vmatprep.subr.bf16.mxu0 0
      %1032 = vmatpush1.bf16.msra.mxu0 0
      %1033 = vmatprep.subr.bf16.mxu0 0
      %1034 = vmatpush1.bf16.msra.mxu0 0
      %1035 = vmatprep.subr.bf16.mxu0 0
      %1036 = vmatpush1.bf16.msra.mxu0 0
      %1037 = vmatprep.subr.bf16.mxu0 0
      %1038 = vmatpush1.bf16.msra.mxu0 0
      %1039 = vmatprep.subr.bf16.mxu0 0
      %1040 = vmatpush1.bf16.msra.mxu0 0
      %1041 = vmatprep.mubr.bf16.mxu0 0
      %1042 = vmatmul.mubr.bf16.gmra.mrb[0].mxu0 %v1004
      %v1043 = vpop.f32.mrb[0].mxu0
      %v1044 = vadd.f32 0.0, %v1043
      %v1045 = vpop.f32.mrb[0].mxu0
      %v1046 = vpop.f32.mrb[0].mxu0
      %v1047 = vpop.f32.mrb[0].mxu0
      %1048 = vdwg.mxu0
      %v1049 = vadd.f32 %v887, %v1044
      %1050 = vrot.lane.b32.xlu0 %v551, 104
      %v1051 = vpop.permute.xlu0 %1050
      %1052 = vrot.lane.b32.xlu0 %v551, 72
      %v1053 = vpop.permute.xlu0 %1052
      %v1055 = vsel %vm555, %v1051, 0
      %v1058 = vsel %vm555, %v1053, 0
      %1060 = vmatprep.subr.bf16.mxu0 0
      %1061 = vmatpush1.bf16.xpose.msra.mxu0 %v1058
      %1062 = vmatprep.subr.bf16.mxu0 0
      %1063 = vmatpush1.bf16.xpose.msra.mxu0 0
      %1064 = vmatprep.subr.bf16.mxu0 0
      %1065 = vmatpush1.bf16.xpose.msra.mxu0 0
      %1066 = vmatprep.subr.bf16.mxu0 0
      %1067 = vmatpush1.bf16.xpose.msra.mxu0 0
      %1068 = vmatprep.subr.bf16.mxu0 0
      %1069 = vmatpush1.bf16.xpose.msra.mxu0 0
      %1070 = vmatprep.subr.bf16.mxu0 0
      %1071 = vmatpush1.bf16.xpose.msra.mxu0 0
      %1072 = vmatprep.subr.bf16.mxu0 0
      %1073 = vmatpush1.bf16.xpose.msra.mxu0 0
      %1074 = vmatprep.subr.bf16.mxu0 0
      %1075 = vmatpush1.bf16.xpose.msra.mxu0 0
      %1076 = vmatprep.subr.bf16.mxu0 0
      %1077 = vmatpush1.bf16.xpose.msra.mxu0 0
      %1078 = vmatprep.subr.bf16.mxu0 0
      %1079 = vmatpush1.bf16.xpose.msra.mxu0 0
      %1080 = vmatprep.subr.bf16.mxu0 0
      %1081 = vmatpush1.bf16.xpose.msra.mxu0 0
      %1082 = vmatprep.subr.bf16.mxu0 0
      %1083 = vmatpush1.bf16.xpose.msra.mxu0 0
      %1084 = vmatprep.subr.bf16.mxu0 0
      %1085 = vmatpush1.bf16.xpose.msra.mxu0 0
      %1086 = vmatprep.subr.bf16.mxu0 0
      %1087 = vmatpush1.bf16.xpose.msra.mxu0 0
      %1088 = vmatprep.subr.bf16.mxu0 0
      %1089 = vmatpush1.bf16.xpose.msra.mxu0 0
      %1090 = vmatprep.subr.bf16.mxu0 0
      %1091 = vmatpush1.bf16.xpose.msra.mxu0 0
      %1092 = vmatprep.mubr.bf16.mxu0 0
      %1093 = vmatmul.mubr.bf16.gmra.mrb[0].mxu0 %v1055
      %v1094 = vpop.f32.mrb[0].mxu0
      %v1095 = vadd.f32 0.0, %v1094
      %v1096 = vpop.f32.mrb[0].mxu0
      %v1097 = vpop.f32.mrb[0].mxu0
      %v1098 = vpop.f32.mrb[0].mxu0
      %1099 = vdwg.mxu0
      %v1100 = vmul.f32 %v1095, 0.35355338
      %v1101 = vadd.f32 %v1100, %v607
      %v1102 = vsel %vm555, %v1101, -inf
      %1103 = vmax.xlane.f32.xlu0 %v1102
      %v1104 = vpop.xlane.xlu0 %1103
      %v1105 = vsub.f32 %v1101, %v1104
      %v1106 = vmul.f32 %v1105, 1.442695
      %v1107 = vpow.pop %v1106
      %v1108 = vsel %vm555, %v1107, 0.0
      %1109 = vadd.xlane.f32.xlu0 %v1108
      %v1110 = vpop.xlane.xlu0 %1109
      %v1111 = vrcp.pop %v1110
      %v1112 = vmul.f32 %v1107, %v1111
      %v1113 = vpack.c.bf16 %v1112, %v1112
      %1114 = vrot.lane.b32.xlu0 %v551, 40
      %v1115 = vpop.permute.xlu0 %1114
      %v1117 = vsel %vm555, %v1113, 0
      %v1120 = vsel %vm627, %v1115, 0
      %1122 = vmatprep.subr.bf16.mxu0 0
      %1123 = vmatpush1.bf16.msra.mxu0 %v1120
      %1124 = vmatprep.subr.bf16.mxu0 0
      %1125 = vmatpush1.bf16.msra.mxu0 0
      %1126 = vmatprep.subr.bf16.mxu0 0
      %1127 = vmatpush1.bf16.msra.mxu0 0
      %1128 = vmatprep.subr.bf16.mxu0 0
      %1129 = vmatpush1.bf16.msra.mxu0 0
      %1130 = vmatprep.subr.bf16.mxu0 0
      %1131 = vmatpush1.bf16.msra.mxu0 0
      %1132 = vmatprep.subr.bf16.mxu0 0
      %1133 = vmatpush1.bf16.msra.mxu0 0
      %1134 = vmatprep.subr.bf16.mxu0 0
      %1135 = vmatpush1.bf16.msra.mxu0 0
      %1136 = vmatprep.subr.bf16.mxu0 0
      %1137 = vmatpush1.bf16.msra.mxu0 0
      %1138 = vmatprep.subr.bf16.mxu0 0
      %1139 = vmatpush1.bf16.msra.mxu0 0
      %1140 = vmatprep.subr.bf16.mxu0 0
      %1141 = vmatpush1.bf16.msra.mxu0 0
      %1142 = vmatprep.subr.bf16.mxu0 0
      %1143 = vmatpush1.bf16.msra.mxu0 0
      %1144 = vmatprep.subr.bf16.mxu0 0
      %1145 = vmatpush1.bf16.msra.mxu0 0
      %1146 = vmatprep.subr.bf16.mxu0 0
      %1147 = vmatpush1.bf16.msra.mxu0 0
      %1148 = vmatprep.subr.bf16.mxu0 0
      %1149 = vmatpush1.bf16.msra.mxu0 0
      %1150 = vmatprep.subr.bf16.mxu0 0
      %1151 = vmatpush1.bf16.msra.mxu0 0
      %1152 = vmatprep.subr.bf16.mxu0 0
      %1153 = vmatpush1.bf16.msra.mxu0 0
      %1154 = vmatprep.mubr.bf16.mxu0 0
      %1155 = vmatmul.mubr.bf16.gmra.mrb[0].mxu0 %v1117
      %v1156 = vpop.f32.mrb[0].mxu0
      %v1157 = vadd.f32 0.0, %v1156
      %v1158 = vpop.f32.mrb[0].mxu0
      %v1159 = vpop.f32.mrb[0].mxu0
      %v1160 = vpop.f32.mrb[0].mxu0
      %1161 = vdwg.mxu0
      %v1162 = vpack.c.bf16 %v1157, %v1157
      %s1163 = scalar_lea.vmem %s4, 12
      %v1164 = vld [vmem:[%s1163] sm:$0xf]
      %v1166 = vsel %vm555, %v1162, 0
      %v1169 = vsel %vm627, %v1164, 0
      %1171 = vmatprep.subr.bf16.mxu0 0
      %1172 = vmatpush1.bf16.msra.mxu0 %v1169
      %1173 = vmatprep.subr.bf16.mxu0 0
      %1174 = vmatpush1.bf16.msra.mxu0 0
      %1175 = vmatprep.subr.bf16.mxu0 0
      %1176 = vmatpush1.bf16.msra.mxu0 0
      %1177 = vmatprep.subr.bf16.mxu0 0
      %1178 = vmatpush1.bf16.msra.mxu0 0
      %1179 = vmatprep.subr.bf16.mxu0 0
      %1180 = vmatpush1.bf16.msra.mxu0 0
      %1181 = vmatprep.subr.bf16.mxu0 0
      %1182 = vmatpush1.bf16.msra.mxu0 0
      %1183 = vmatprep.subr.bf16.mxu0 0
      %1184 = vmatpush1.bf16.msra.mxu0 0
      %1185 = vmatprep.subr.bf16.mxu0 0
      %1186 = vmatpush1.bf16.msra.mxu0 0
      %1187 = vmatprep.subr.bf16.mxu0 0
      %1188 = vmatpush1.bf16.msra.mxu0 0
      %1189 = vmatprep.subr.bf16.mxu0 0
      %1190 = vmatpush1.bf16.msra.mxu0 0
      %1191 = vmatprep.subr.bf16.mxu0 0
      %1192 = vmatpush1.bf16.msra.mxu0 0
      %1193 = vmatprep.subr.bf16.mxu0 0
      %1194 = vmatpush1.bf16.msra.mxu0 0
      %1195 = vmatprep.subr.bf16.mxu0 0
      %1196 = vmatpush1.bf16.msra.mxu0 0
      %1197 = vmatprep.subr.bf16.mxu0 0
      %1198 = vmatpush1.bf16.msra.mxu0 0
      %1199 = vmatprep.subr.bf16.mxu0 0
      %1200 = vmatpush1.bf16.msra.mxu0 0
      %1201 = vmatprep.subr.bf16.mxu0 0
      %1202 = vmatpush1.bf16.msra.mxu0 0
      %1203 = vmatprep.mubr.bf16.mxu0 0
      %1204 = vmatmul.mubr.bf16.gmra.mrb[0].mxu0 %v1166
      %v1205 = vpop.f32.mrb[0].mxu0
      %v1206 = vadd.f32 0.0, %v1205
      %v1207 = vpop.f32.mrb[0].mxu0
      %v1208 = vpop.f32.mrb[0].mxu0
      %v1209 = vpop.f32.mrb[0].mxu0
      %1210 = vdwg.mxu0
      %v1211 = vadd.f32 %v1049, %v1206
      %v1212 = vadd.f32 %v1211, %v478
      %v1213 = vld [vmem:[%s6] sm:$0x1]
      %v1214 = vld [vmem:[%s7] sm:$0x1]
      %v1215 = vsel %vm506, %v1212, 0.0
      %1216 = vadd.xlane.f32.xlu0 %v1215
      %v1217 = vpop.xlane.xlu0 %1216
      %v1218 = vrcp.pop 32.0
      %v1219 = vmul.f32 %v1217, %v1218
      %v1220 = vsub.f32 %v1212, %v1219
      %v1221 = vmul.f32 %v1220, %v1220
      %v1222 = vsel %vm506, %v1221, 0.0
      %1223 = vadd.xlane.f32.xlu0 %v1222
      %v1224 = vpop.xlane.xlu0 %1223
      %v1225 = vmul.f32 %v1224, %v1218
      %v1226 = vadd.f32 %v1225, 1e-05
      %v1227 = vrsqrt.pop %v1226
      %v1228 = vmul.f32 %v1220, %v1227
      %v1230 = vlaneseq
      %v1231 = vshrl.u32 %v1230, 7
      %v1232 = vsub.s32 0, %v1231
      %v1233 = vrot.slane %v1213, %v1232
      %v1235 = vmul.f32 %v1228, %v1233
      %v1237 = vlaneseq
      %v1238 = vshrl.u32 %v1237, 7
      %v1239 = vsub.s32 0, %v1238
      %v1240 = vrot.slane %v1214, %v1239
      %v1242 = vadd.f32 %v1235, %v1240
      %v1243 = vpack.c.bf16 %v1242, %v1242
      %v1244 = vld [vmem:[%s8] sm:$0xf]
      %v1245 = vld [vmem:[%s8 + $0x4] sm:$0xf]
      %v1246 = vld [vmem:[%s8 + $0x8] sm:$0xf]
      %v1247 = vld [vmem:[%s8 + $0xc] sm:$0xf]
      %v1248 = vld [vmem:[%s9] sm:$0x1]
      %v1250 = vlaneseq
      %v1251 = vshrl.u32 %v1250, 7
      %v1252 = vsub.s32 0, %v1251
      %v1253 = vrot.slane %v1248, %v1252
      %v1259 = vunpack.c.l.b16 %v1244
      %v1260 = vunpack.c.l.b16 %v1245
      %v1261 = vunpack.c.l.b16 %v1246
      %v1262 = vunpack.c.l.b16 %v1247
      %v1263 = vpack.c.b16 %v1260, %v1259
      %v1264 = vpack.c.b16 %v1262, %v1261
      %v1268 = vsel %vm506, %v1243, 0
      %1270 = vmatprep.subr.bf16.mxu0 0
      %1271 = vmatpush1.bf16.msra.mxu0 %v1263
      %1272 = vmatprep.subr.bf16.mxu0 0
      %1273 = vmatpush1.bf16.msra.mxu0 %v1264
      %1274 = vmatprep.subr.bf16.mxu0 0
      %1275 = vmatpush1.bf16.msra.mxu0 0
      %1276 = vmatprep.subr.bf16.mxu0 0
      %1277 = vmatpush1.bf16.msra.mxu0 0
      %1278 = vmatprep.subr.bf16.mxu0 0
      %1279 = vmatpush1.bf16.msra.mxu0 0
      %1280 = vmatprep.subr.bf16.mxu0 0
      %1281 = vmatpush1.bf16.msra.mxu0 0
      %1282 = vmatprep.subr.bf16.mxu0 0
      %1283 = vmatpush1.bf16.msra.mxu0 0
      %1284 = vmatprep.subr.bf16.mxu0 0
      %1285 = vmatpush1.bf16.msra.mxu0 0
      %1286 = vmatprep.subr.bf16.mxu0 0
      %1287 = vmatpush1.bf16.msra.mxu0 0
      %1288 = vmatprep.subr.bf16.mxu0 0
      %1289 = vmatpush1.bf16.msra.mxu0 0
      %1290 = vmatprep.subr.bf16.mxu0 0
      %1291 = vmatpush1.bf16.msra.mxu0 0
      %1292 = vmatprep.subr.bf16.mxu0 0
      %1293 = vmatpush1.bf16.msra.mxu0 0
      %1294 = vmatprep.subr.bf16.mxu0 0
      %1295 = vmatpush1.bf16.msra.mxu0 0
      %1296 = vmatprep.subr.bf16.mxu0 0
      %1297 = vmatpush1.bf16.msra.mxu0 0
      %1298 = vmatprep.subr.bf16.mxu0 0
      %1299 = vmatpush1.bf16.msra.mxu0 0
      %1300 = vmatprep.subr.bf16.mxu0 0
      %1301 = vmatpush1.bf16.msra.mxu0 0
      %1302 = vmatprep.mubr.bf16.mxu0 0
      %1303 = vmatmul.mubr.bf16.gmra.mrb[0].mxu0 %v1268
      %v1304 = vpop.f32.mrb[0].mxu0
      %v1305 = vadd.f32 %v1253, %v1304
      %v1306 = vpop.f32.mrb[0].mxu0
      %v1307 = vpop.f32.mrb[0].mxu0
      %v1308 = vpop.f32.mrb[0].mxu0
      %1309 = vdwg.mxu0
      %v1310 = vmul.f32 %v1305, 0.5
      %v1311 = vmul.f32 %v1305, 0.70710677
      %v1312 = verf.f32.pop %v1311
      %v1313 = vadd.f32 %v1312, 1.0
      %v1314 = vmul.f32 %v1310, %v1313
      %v1315 = vpack.c.bf16 %v1314, %v1314
      %v1316 = vld [vmem:[%s10] sm:$0xf]
      %v1317 = vld [vmem:[%s10 + $0x4] sm:$0xf]
      %v1318 = vld [vmem:[%s10 + $0x8] sm:$0xf]
      %v1319 = vld [vmem:[%s10 + $0xc] sm:$0xf]
      %v1320 = vld [vmem:[%s10 + $0x10] sm:$0xf]
      %v1321 = vld [vmem:[%s10 + $0x14] sm:$0xf]
      %v1322 = vld [vmem:[%s10 + $0x18] sm:$0xf]
      %v1323 = vld [vmem:[%s10 + $0x1c] sm:$0xf]
      %v1324 = vld [vmem:[%s11] sm:$0x1]
      %v1326 = vlaneseq
      %v1327 = vshrl.u32 %v1326, 7
      %v1328 = vsub.s32 0, %v1327
      %v1329 = vrot.slane %v1324, %v1328
      %v1339 = vunpack.c.l.b16 %v1316
      %v1340 = vunpack.c.l.b16 %v1317
      %v1341 = vunpack.c.l.b16 %v1318
      %v1342 = vunpack.c.l.b16 %v1319
      %v1343 = vunpack.c.l.b16 %v1320
      %v1344 = vunpack.c.l.b16 %v1321
      %v1345 = vunpack.c.l.b16 %v1322
      %v1346 = vunpack.c.l.b16 %v1323
      %v1347 = vpack.c.b16 %v1340, %v1339
      %v1348 = vpack.c.b16 %v1342, %v1341
      %v1349 = vpack.c.b16 %v1344, %v1343
      %v1350 = vpack.c.b16 %v1346, %v1345
      %vm1355 = vcmask 523264
      %v1357 = vsel %vm1355, %v1315, 0
      %1359 = vmatprep.subr.bf16.mxu0 0
      %1360 = vmatpush1.bf16.msra.mxu0 %v1347
      %1361 = vmatprep.subr.bf16.mxu0 0
      %1362 = vmatpush1.bf16.msra.mxu0 %v1348
      %1363 = vmatprep.subr.bf16.mxu0 0
      %1364 = vmatpush1.bf16.msra.mxu0 %v1349
      %1365 = vmatprep.subr.bf16.mxu0 0
      %1366 = vmatpush1.bf16.msra.mxu0 %v1350
      %1367 = vmatprep.subr.bf16.mxu0 0
      %1368 = vmatpush1.bf16.msra.mxu0 0
      %1369 = vmatprep.subr.bf16.mxu0 0
      %1370 = vmatpush1.bf16.msra.mxu0 0
      %1371 = vmatprep.subr.bf16.mxu0 0
      %1372 = vmatpush1.bf16.msra.mxu0 0
      %1373 = vmatprep.subr.bf16.mxu0 0
      %1374 = vmatpush1.bf16.msra.mxu0 0
      %1375 = vmatprep.subr.bf16.mxu0 0
      %1376 = vmatpush1.bf16.msra.mxu0 0
      %1377 = vmatprep.subr.bf16.mxu0 0
      %1378 = vmatpush1.bf16.msra.mxu0 0
      %1379 = vmatprep.subr.bf16.mxu0 0
      %1380 = vmatpush1.bf16.msra.mxu0 0
      %1381 = vmatprep.subr.bf16.mxu0 0
      %1382 = vmatpush1.bf16.msra.mxu0 0
      %1383 = vmatprep.subr.bf16.mxu0 0
      %1384 = vmatpush1.bf16.msra.mxu0 0
      %1385 = vmatprep.subr.bf16.mxu0 0
      %1386 = vmatpush1.bf16.msra.mxu0 0
      %1387 = vmatprep.subr.bf16.mxu0 0
      %1388 = vmatpush1.bf16.msra.mxu0 0
      %1389 = vmatprep.subr.bf16.mxu0 0
      %1390 = vmatpush1.bf16.msra.mxu0 0
      %1391 = vmatprep.mubr.bf16.mxu0 0
      %1392 = vmatmul.mubr.bf16.gmra.mrb[0].mxu0 %v1357
      %v1393 = vpop.f32.mrb[0].mxu0
      %v1394 = vadd.f32 %v1329, %v1393
      %v1395 = vpop.f32.mrb[0].mxu0
      %v1396 = vpop.f32.mrb[0].mxu0
      %v1397 = vpop.f32.mrb[0].mxu0
      %1398 = vdwg.mxu0
      %v1399 = vadd.f32 %v1394, %v1242
      %v1400 = vld [vmem:[%s12] sm:$0x1]
      %v1401 = vld [vmem:[%s13] sm:$0x1]
      %v1402 = vsel %vm506, %v1399, 0.0
      %1403 = vadd.xlane.f32.xlu0 %v1402
      %v1404 = vpop.xlane.xlu0 %1403
      %v1405 = vmul.f32 %v1404, %v1218
      %v1406 = vsub.f32 %v1399, %v1405
      %v1407 = vmul.f32 %v1406, %v1406
      %v1408 = vsel %vm506, %v1407, 0.0
      %1409 = vadd.xlane.f32.xlu0 %v1408
      %v1410 = vpop.xlane.xlu0 %1409
      %v1411 = vmul.f32 %v1410, %v1218
      %v1412 = vadd.f32 %v1411, 1e-05
      %v1413 = vrsqrt.pop %v1412
      %v1414 = vmul.f32 %v1406, %v1413
      %v1416 = vlaneseq
      %v1417 = vshrl.u32 %v1416, 7
      %v1418 = vsub.s32 0, %v1417
      %v1419 = vrot.slane %v1400, %v1418
      %v1421 = vmul.f32 %v1414, %v1419
      %v1423 = vlaneseq
      %v1424 = vshrl.u32 %v1423, 7
      %v1425 = vsub.s32 0, %v1424
      %v1426 = vrot.slane %v1401, %v1425
      %v1428 = vadd.f32 %v1421, %v1426
      %1429 = vst.msk [vmem:[%s476] sm:$0xff] %vm506, %v1428
      %p1430 = scmp.lt.s32.totalorder %s25, 1
      %s1431 = scalar_select %p1430, %s25, 1
      %s1432 = smul.addr %s1431, 8
      %s1433 = scalar_lea.vmem %s14, %s1432
      // Predicated region
      $region77: #{roberta_forward.4} parent=75 // pred_check
        %p1434 = pneg %p347
      $region78: #{roberta_forward.4} parent=75 // pred_check_branch
        %1436 = sbr.rel (%p1434) target = $region80
      $region79: #{roberta_forward.4} parent=75 // pred_region
        _
      $region80: #{roberta_forward.4} parent=75 // pred_fallthru
        _
    $region76: #{roberta_forward.4} parent=5 // pred_fallthru
      _
    %p1437 = scmp.le.s32.totalorder 2, %s20
    // Predicated region
    $region81: #{roberta_forward.4} parent=5 // pred_check
      %p1438 = pneg %p1437
    $region82: #{roberta_forward.4} parent=5 // pred_check_branch
      %1440 = sbr.rel (%p1438) target = $region84
    $region83: #{roberta_forward.4} parent=5 // pred_region
      %s1441 = ssub.s32 %s20, 2
      // Predicated region
      $region85: #{roberta_forward.4} parent=83 // pred_check
        %p1442 = pneg %p353
      $region86: #{roberta_forward.4} parent=83 // pred_check_branch
        %1444 = sbr.rel (%p1442) target = $region88
      $region87: #{roberta_forward.4} parent=83 // pred_region
        %p1445 = scmp.lt.s32.totalorder %s26, 1
        %s1446 = scalar_select %p1445, %s26, 1
        %s1447 = smul.addr %s1446, 8
        %s1448 = scalar_lea.vmem %s14, %s1447
      $region88: #{roberta_forward.4} parent=83 // pred_fallthru
        _
    $region84: #{roberta_forward.4} parent=5 // pred_fallthru
      _
  $region6: #{roberta_forward.4} parent=0 // loop_footer
    %s24 = sadd.s32 1, %s20
  $region7: #{roberta_forward.4} parent=0 // loop_footer_branch
    %19 = sbr.rel target = $region3
  $region8: #{roberta_forward.4} parent=0 // loop_exit
    _

</llo_original>
